<compile_context>
chip_gen: v7x
topology: tpu7x:2x2x1
jax: 0.10.0
libtpu: 0.0.40
codegen_flags: <defaults>
</compile_context>

<pallas_src>
import functools

import jax
import jax.numpy as jnp
from jax.experimental import pallas as pl
from jax.experimental.pallas import tpu as pltpu


# ----------------------------- small helpers (glue) -----------------------------

def _round_up(x, m):
    return -(-x // m) * m


def _pad2d(x, rows, cols):
    r, c = x.shape
    pr, pc = rows - r, cols - c
    if pr == 0 and pc == 0:
        return x
    return jnp.pad(x, ((0, pr), (0, pc)))


def _pad_vec(v, n):
    return v if v.shape[0] == n else jnp.pad(v, (0, n - v.shape[0]))


def _im2col(x, kh, kw, stride, pad):
    """x: (N, H, W, C) -> patches (N*OH*OW, KH*KW*C) matching (KH, KW, Cin) weight order."""
    n, h, w, c = x.shape
    xp = jnp.pad(x, ((0, 0), (pad, pad), (pad, pad), (0, 0)))
    oh = (h + 2 * pad - kh) // stride + 1
    ow = (w + 2 * pad - kw) // stride + 1
    cols = []
    for i in range(kh):
        for j in range(kw):
            cols.append(xp[:, i:i + stride * oh:stride, j:j + stride * ow:stride, :])
    p = jnp.stack(cols, axis=3)                      # (N, OH, OW, KH*KW, C)
    return p.reshape(n * oh * ow, kh * kw * c), oh, ow


def _choose_tm(m):
    """M-tile: multiple of 16 (bf16 sublane packing), capped at 512, and split so there
    are >= 2 M tiles whenever possible (v7x megacore balance)."""
    mr = _round_up(m, 16)
    tm = min(512, mr)
    if mr // tm < 2 and mr >= 32:
        tm = _round_up(pl.cdiv(mr, 2), 16)
    return tm


# ----------------------------- Pallas kernels -----------------------------

def _conv_matmul_kernel(a_ref, b_ref, *rest, act, with_stats):
    """Tiled matmul, f32 accumulator, optional fused LeakyReLU and fused per-channel
    sum / sum-of-squares (packed into a single (8, tn) stats block: sublanes 0-3 = sum,
    sublanes 4-7 = sumsq) for BatchNorm batch statistics."""
    if with_stats:
        o_ref, s_ref, acc_ref = rest
    else:
        o_ref, acc_ref = rest

    k = pl.program_id(2)

    @pl.when(k == 0)
    def _():
        acc_ref[...] = jnp.zeros_like(acc_ref)

    acc_ref[...] += jnp.dot(a_ref[...], b_ref[...],
                            preferred_element_type=jnp.float32)

    @pl.when(k == pl.num_programs(2) - 1)
    def _():
        y = acc_ref[...]
        if act == "leaky":
            y = jnp.where(y > 0, y, 0.2 * y)
        o_ref[...] = y.astype(o_ref.dtype)
        if with_stats:
            # Stats from the f32 accumulator (not the bf16 store), one packed output.
            cs = jnp.sum(y, axis=0, keepdims=True)
            cs2 = jnp.sum(y * y, axis=0, keepdims=True)
            row = jax.lax.broadcasted_iota(jnp.int32, s_ref.shape, 0)
            s_ref[...] = jnp.where(row < 4,
                                   jnp.broadcast_to(cs, s_ref.shape),
                                   jnp.broadcast_to(cs2, s_ref.shape))


def conv_matmul(a, b, *, act="none", with_stats=False, out_dtype=jnp.bfloat16):
    """a: (M, K) bf16 im2col matrix, b: (K, N) bf16 weight matrix.

    Returns o_padded (Mp, Np) and, if with_stats, (col_sum, col_sumsq) f32 of length Np."""
    m, k = a.shape
    _, n = b.shape

    tm = _choose_tm(m)
    tk = min(512, _round_up(k, 128))
    tn = min(256, _round_up(n, 128))
    mp = _round_up(m, tm)
    kp = _round_up(k, tk)
    np_ = _round_up(n, tn)

    a = _pad2d(a, mp, kp)
    b = _pad2d(b, kp, np_)

    gm, gn, gk = mp // tm, np_ // tn, kp // tk

    cost = pl.CostEstimate(
        flops=2 * mp * kp * np_,
        transcendentals=0,
        bytes_accessed=(mp * kp * 2 + kp * np_ * 2
                        + mp * np_ * jnp.dtype(out_dtype).itemsize),
    )

    if with_stats:
        out_shape = (jax.ShapeDtypeStruct((mp, np_), out_dtype),
                     jax.ShapeDtypeStruct((8 * gm, np_), jnp.float32))
        out_specs = (pl.BlockSpec((tm, tn), lambda i, j, kk: (i, j)),
                     pl.BlockSpec((8, tn), lambda i, j, kk: (i, j)))
    else:
        out_shape = jax.ShapeDtypeStruct((mp, np_), out_dtype)
        out_specs = pl.BlockSpec((tm, tn), lambda i, j, kk: (i, j))

    result = pl.pallas_call(
        functools.partial(_conv_matmul_kernel, act=act, with_stats=with_stats),
        out_shape=out_shape,
        grid_spec=pltpu.PrefetchScalarGridSpec(
            num_scalar_prefetch=0,
            grid=(gm, gn, gk),
            in_specs=[
                pl.BlockSpec((tm, tk), lambda i, j, kk: (i, kk)),
                pl.BlockSpec((tk, tn), lambda i, j, kk: (kk, j)),
            ],
            out_specs=out_specs,
            scratch_shapes=[pltpu.VMEM((tm, tn), jnp.float32)],
        ),
        compiler_params=pltpu.CompilerParams(
            dimension_semantics=("parallel", "parallel", "arbitrary"),
            vmem_limit_bytes=32 * 1024 * 1024,
        ),
        cost_estimate=cost,
    )(a, b)

    if not with_stats:
        return result, None, None
    o, stats = result
    col_s = jnp.sum(stats[0::8, :], axis=0)
    col_sq = jnp.sum(stats[4::8, :], axis=0)
    return o, col_s, col_sq


def _affine_leaky_kernel(x_ref, scale_ref, shift_ref, o_ref):
    # Fused BatchNorm affine + LeakyReLU(0.2); bf16 in, f32 math, bf16 out.
    y = x_ref[...].astype(jnp.float32) * scale_ref[...] + shift_ref[...]
    o_ref[...] = jnp.where(y > 0, y, 0.2 * y).astype(o_ref.dtype)


def affine_leaky(x, scale, shift, out_dtype=jnp.bfloat16):
    """x: (Mp, Np) bf16 (Mp mult of 16, Np mult of 128); scale/shift: (1, Np) f32."""
    m, n = x.shape
    tm = m
    if m >= 32 and (m // 2) % 16 == 0:
        tm = m // 2                       # >=2 blocks so both v7x cores get work
    if m >= 1024 and m % 512 == 0:
        tm = 512
    grid_m = m // tm
    return pl.pallas_call(
        _affine_leaky_kernel,
        out_shape=jax.ShapeDtypeStruct((m, n), out_dtype),
        grid=(grid_m,),
        in_specs=[
            pl.BlockSpec((tm, n), lambda i: (i, 0)),
            pl.BlockSpec((1, n), lambda i: (0, 0)),
            pl.BlockSpec((1, n), lambda i: (0, 0)),
        ],
        out_specs=pl.BlockSpec((tm, n), lambda i: (i, 0)),
        compiler_params=pltpu.CompilerParams(
            dimension_semantics=("parallel",),
            vmem_limit_bytes=32 * 1024 * 1024,
        ),
    )(x, scale, shift)


# ----------------------------- layer wrappers -----------------------------

_SMALL_M = 64   # below this, pallas_call dispatch dwarfs useful work (perf review)


def conv_leaky(x, w, stride, pad):
    """Conv (no bias) + LeakyReLU(0.2), NHWC bf16 in/out."""
    kh, kw, cin, cout = w.shape
    n = x.shape[0]
    a, oh, ow = _im2col(x, kh, kw, stride, pad)
    m = a.shape[0]
    b = w.reshape(kh * kw * cin, cout)
    if m <= _SMALL_M:
        y = jnp.dot(a.astype(jnp.float32), b, preferred_element_type=jnp.float32)
        y = jnp.where(y > 0, y, 0.2 * y).astype(jnp.bfloat16)
        return y.reshape(n, oh, ow, cout)
    o, _, _ = conv_matmul(a.astype(jnp.bfloat16), b.astype(jnp.bfloat16),
                          act="leaky", with_stats=False, out_dtype=jnp.bfloat16)
    return o[:m, :cout].reshape(n, oh, ow, cout)


def conv_bn_leaky(x, w, gamma, beta, stride, pad, eps=1e-5):
    """Conv (no bias) + BatchNorm2d (training-mode batch stats, biased var) +
    LeakyReLU(0.2).  NHWC bf16 in/out."""
    kh, kw, cin, cout = w.shape
    n = x.shape[0]
    a, oh, ow = _im2col(x, kh, kw, stride, pad)
    m = a.shape[0]
    b = w.reshape(kh * kw * cin, cout)

    if m <= _SMALL_M:
        # Tiny problem: let XLA fuse the whole thing (perf review, opt #3).
        y = jnp.dot(a.astype(jnp.float32), b, preferred_element_type=jnp.float32)
        mean = jnp.mean(y, axis=0)
        var = jnp.maximum(jnp.mean(y * y, axis=0) - mean * mean, 0.0)
        scale = gamma * jax.lax.rsqrt(var + eps)
        shift = beta - mean * scale
        z = y * scale + shift
        z = jnp.where(z > 0, z, 0.2 * z).astype(jnp.bfloat16)
        return z.reshape(n, oh, ow, cout)

    # Pallas path: matmul with fused per-channel sum/sumsq; bf16 activation writeback.
    o, col_s, col_sq = conv_matmul(a.astype(jnp.bfloat16), b.astype(jnp.bfloat16),
                                   act="none", with_stats=True, out_dtype=jnp.bfloat16)
    np_ = o.shape[1]
    mean = col_s / m                                      # padded rows contribute zero
    var = jnp.maximum(col_sq / m - mean * mean, 0.0)      # clamp cancellation
    gamma_p = _pad_vec(gamma, np_)                        # padded channels -> scale 0
    beta_p = _pad_vec(beta, np_)
    scale = gamma_p * jax.lax.rsqrt(var + eps)
    shift = beta_p - mean * scale
    z = affine_leaky(o, scale[None, :], shift[None, :], out_dtype=jnp.bfloat16)
    return z[:m, :cout].reshape(n, oh, ow, cout)


def discriminator_forward(x_nchw, params):
    # NCHW -> NHWC; bf16 activations feed the bf16-native MXU (f32 accumulation inside).
    x = jnp.transpose(x_nchw, (0, 2, 3, 1)).astype(jnp.bfloat16)

    # Layer 1: Conv(3 -> nf, k4 s2 p1) + LeakyReLU(0.2) fused in the matmul epilogue.
    x = conv_leaky(x, params["w1"], 2, 1)

    # Layers 2-4: Conv + BatchNorm + LeakyReLU.
    for wi, gi, bi in (("w2", "g2", "b2"), ("w3", "g3", "b3"), ("w4", "g4", "b4")):
        x = conv_bn_leaky(x, params[wi], params[gi], params[bi], 2, 1)

    # Layer 5: Conv(8nf -> 1, k2 s1 p0) + Sigmoid, then .view(-1,1).squeeze(1).
    # M = batch, Cout = 1: far too small for the MXU / pallas_call, so plain JAX (f32).
    kh, kw, cin, cout = params["w5"].shape
    a5, _, _ = _im2col(x, kh, kw, 1, 0)
    w5 = params["w5"].reshape(kh * kw * cin, cout)
    logits = jnp.dot(a5.astype(jnp.float32), w5, preferred_element_type=jnp.float32)
    return jax.nn.sigmoid(logits).reshape(-1, 1)[:, 0]


# ----------------------------- deterministic params -----------------------------

def init_params(key, nf=16):
    keys = jax.random.split(key, 5)

    def conv_w(k, kh, kw, cin, cout):
        return jax.random.normal(k, (kh, kw, cin, cout), jnp.float32) * 0.05

    return {
        "w1": conv_w(keys[0], 4, 4, 3, nf),
        "w2": conv_w(keys[1], 4, 4, nf, 2 * nf),
        "w3": conv_w(keys[2], 4, 4, 2 * nf, 4 * nf),
        "w4": conv_w(keys[3], 4, 4, 4 * nf, 8 * nf),
        "w5": conv_w(keys[4], 2, 2, 8 * nf, 1),
        # BatchNorm2d default init: weight = 1, bias = 0.
        "g2": jnp.ones((2 * nf,), jnp.float32), "b2": jnp.zeros((2 * nf,), jnp.float32),
        "g3": jnp.ones((4 * nf,), jnp.float32), "b3": jnp.zeros((4 * nf,), jnp.float32),
        "g4": jnp.ones((8 * nf,), jnp.float32), "b4": jnp.zeros((8 * nf,), jnp.float32),
    }


if __name__ == "__main__":
    key = jax.random.PRNGKey(0)
    kp, kx = jax.random.split(key)
    nf = 16                                                  # small num_filters for the demo
    params = init_params(kp, nf)
    x = jax.random.normal(kx, (2, 3, 32, 32), jnp.float32)   # NCHW, as in PyTorch
    out = jax.jit(discriminator_forward)(x, params)
    out = jax.block_until_ready(out)
    assert out.shape == (2,), out.shape
    assert bool(jnp.all((out >= 0.0) & (out <= 1.0)))        # post-sigmoid range sanity
    print("KERNEL_OK")
</pallas_src>

<mosaic_0001>
module attributes {stable_mosaic.version = 11 : i64} {
  func.func @_conv_matmul_kernel(%arg0: i32, %arg1: i32, %arg2: i32, %arg3: memref<256x128xbf16, #tpu.memory_space<vmem>>, %arg4: memref<128x128xbf16, #tpu.memory_space<vmem>>, %arg5: memref<256x128xbf16, #tpu.memory_space<vmem>>, %arg6: memref<256x128xf32, #tpu.memory_space<vmem>>) attributes {dimension_semantics = [#tpu.dimension_semantics<parallel>, #tpu.dimension_semantics<parallel>, #tpu.dimension_semantics<arbitrary>], iteration_bounds = array<i64: 2, 1, 1>, scalar_prefetch = 0 : i64, scratch_operands = 1 : i64, tpu.core_type = #tpu.core_type<tc>, window_params = [{transform_indices = @transform_0, window_bounds = array<i64: 256, 128>}, {transform_indices = @transform_1, window_bounds = array<i64: 128, 128>}, {transform_indices = @transform_2, window_bounds = array<i64: 256, 128>}]} {
    %c0_i32 = arith.constant 0 : i32
    %0 = arith.cmpi eq, %arg2, %c0_i32 : i32
    %1 = arith.extui %0 : i1 to i32
    %c0_i32_0 = arith.constant 0 : i32
    %2 = arith.cmpi ne, %1, %c0_i32_0 : i32
    scf.if %2 {
      %cst_10 = arith.constant 0.000000e+00 : f32
      %12 = vector.broadcast %cst_10 : f32 to vector<256x128xf32>
      %c0_11 = arith.constant 0 : index
      %c0_12 = arith.constant 0 : index
      %13 = vector.load %arg6[%c0_11, %c0_12] : memref<256x128xf32, #tpu.memory_space<vmem>>, vector<256x128xf32>
      tpu.vector_store %arg6[%c0_11, %c0_12], %12 {strides = array<i32>} : memref<256x128xf32, #tpu.memory_space<vmem>>, vector<256x128xf32>,
    } else {
    }
    %c0 = arith.constant 0 : index
    %c0_1 = arith.constant 0 : index
    %3 = vector.load %arg6[%c0, %c0_1] : memref<256x128xf32, #tpu.memory_space<vmem>>, vector<256x128xf32>
    %c0_2 = arith.constant 0 : index
    %c0_3 = arith.constant 0 : index
    %4 = vector.load %arg3[%c0_2, %c0_3] : memref<256x128xbf16, #tpu.memory_space<vmem>>, vector<256x128xbf16>
    %c0_4 = arith.constant 0 : index
    %c0_5 = arith.constant 0 : index
    %5 = vector.load %arg4[%c0_4, %c0_5] : memref<128x128xbf16, #tpu.memory_space<vmem>>, vector<128x128xbf16>
    %cst = arith.constant dense<0.000000e+00> : vector<256x128xf32>
    %6 = tpu.matmul %4, %5, %cst {dimension_numbers = #tpu.dot_dimension_numbers<[1], [0], [0], [1], [0, 0, 1, 1], [], []>} : vector<256x128xbf16>, vector<128x128xbf16>, vector<256x128xf32> -> vector<256x128xf32>
    %7 = arith.addf %3, %6 : vector<256x128xf32>
    %c0_6 = arith.constant 0 : index
    %c0_7 = arith.constant 0 : index
    %8 = vector.load %arg6[%c0_6, %c0_7] : memref<256x128xf32, #tpu.memory_space<vmem>>, vector<256x128xf32>
    tpu.vector_store %arg6[%c0_6, %c0_7], %7 {strides = array<i32>} : memref<256x128xf32, #tpu.memory_space<vmem>>, vector<256x128xf32>,
    %c0_i32_8 = arith.constant 0 : i32
    %9 = arith.cmpi eq, %arg2, %c0_i32_8 : i32
    %10 = arith.extui %9 : i1 to i32
    %c0_i32_9 = arith.constant 0 : i32
    %11 = arith.cmpi ne, %10, %c0_i32_9 : i32
    scf.if %11 {
      %c0_10 = arith.constant 0 : index
      %c0_11 = arith.constant 0 : index
      %12 = vector.load %arg6[%c0_10, %c0_11] : memref<256x128xf32, #tpu.memory_space<vmem>>, vector<256x128xf32>
      %cst_12 = arith.constant 0.000000e+00 : f32
      %13 = vector.broadcast %cst_12 : f32 to vector<256x128xf32>
      %14 = arith.cmpf ogt, %12, %13 : vector<256x128xf32>
      %cst_13 = arith.constant 2.000000e-01 : f32
      %15 = vector.broadcast %cst_13 : f32 to vector<256x128xf32>
      %16 = arith.mulf %15, %12 : vector<256x128xf32>
      %17 = arith.select %14, %12, %16 : vector<256x128xi1>, vector<256x128xf32>
      %18 = arith.truncf %17 : vector<256x128xf32> to vector<256x128xbf16>
      %c0_14 = arith.constant 0 : index
      %c0_15 = arith.constant 0 : index
      %19 = vector.load %arg5[%c0_14, %c0_15] : memref<256x128xbf16, #tpu.memory_space<vmem>>, vector<256x128xbf16>
      tpu.vector_store %arg5[%c0_14, %c0_15], %18 {strides = array<i32>} : memref<256x128xbf16, #tpu.memory_space<vmem>>, vector<256x128xbf16>,
    } else {
    }
    return
  }
  func.func @transform_0(%arg0: i32, %arg1: i32, %arg2: i32) -> (i32, i32) {
    %c0_i32 = arith.constant 0 : i32
    return %arg0, %arg2 : i32, i32
  }
  func.func @transform_1(%arg0: i32, %arg1: i32, %arg2: i32) -> (i32, i32) {
    %c0_i32 = arith.constant 0 : i32
    return %arg2, %arg1 : i32, i32
  }
  func.func @transform_2(%arg0: i32, %arg1: i32, %arg2: i32) -> (i32, i32) {
    %c0_i32 = arith.constant 0 : i32
    return %arg0, %arg1 : i32, i32
  }
}

module attributes {stable_mosaic.version = 11 : i64} {
  func.func @_conv_matmul_kernel(%arg0: i32, %arg1: i32, %arg2: i32, %arg3: memref<64x256xbf16, #tpu.memory_space<vmem>>, %arg4: memref<256x128xbf16, #tpu.memory_space<vmem>>, %arg5: memref<64x128xbf16, #tpu.memory_space<vmem>>, %arg6: memref<8x128xf32, #tpu.memory_space<vmem>>, %arg7: memref<64x128xf32, #tpu.memory_space<vmem>>) attributes {dimension_semantics = [#tpu.dimension_semantics<parallel>, #tpu.dimension_semantics<parallel>, #tpu.dimension_semantics<arbitrary>], iteration_bounds = array<i64: 2, 1, 1>, scalar_prefetch = 0 : i64, scratch_operands = 1 : i64, tpu.core_type = #tpu.core_type<tc>, window_params = [{transform_indices = @transform_0, window_bounds = array<i64: 64, 256>}, {transform_indices = @transform_1, window_bounds = array<i64: 256, 128>}, {transform_indices = @transform_2, window_bounds = array<i64: 64, 128>}, {transform_indices = @transform_3, window_bounds = array<i64: 8, 128>}]} {
    %c0_i32 = arith.constant 0 : i32
    %0 = arith.cmpi eq, %arg2, %c0_i32 : i32
    %1 = arith.extui %0 : i1 to i32
    %c0_i32_0 = arith.constant 0 : i32
    %2 = arith.cmpi ne, %1, %c0_i32_0 : i32
    scf.if %2 {
      %cst_10 = arith.constant 0.000000e+00 : f32
      %12 = vector.broadcast %cst_10 : f32 to vector<64x128xf32>
      %c0_11 = arith.constant 0 : index
      %c0_12 = arith.constant 0 : index
      %13 = vector.load %arg7[%c0_11, %c0_12] : memref<64x128xf32, #tpu.memory_space<vmem>>, vector<64x128xf32>
      tpu.vector_store %arg7[%c0_11, %c0_12], %12 {strides = array<i32>} : memref<64x128xf32, #tpu.memory_space<vmem>>, vector<64x128xf32>,
    } else {
    }
    %c0 = arith.constant 0 : index
    %c0_1 = arith.constant 0 : index
    %3 = vector.load %arg7[%c0, %c0_1] : memref<64x128xf32, #tpu.memory_space<vmem>>, vector<64x128xf32>
    %c0_2 = arith.constant 0 : index
    %c0_3 = arith.constant 0 : index
    %4 = vector.load %arg3[%c0_2, %c0_3] : memref<64x256xbf16, #tpu.memory_space<vmem>>, vector<64x256xbf16>
    %c0_4 = arith.constant 0 : index
    %c0_5 = arith.constant 0 : index
    %5 = vector.load %arg4[%c0_4, %c0_5] : memref<256x128xbf16, #tpu.memory_space<vmem>>, vector<256x128xbf16>
    %cst = arith.constant dense<0.000000e+00> : vector<64x128xf32>
    %6 = tpu.matmul %4, %5, %cst {dimension_numbers = #tpu.dot_dimension_numbers<[1], [0], [0], [1], [0, 0, 1, 1], [], []>} : vector<64x256xbf16>, vector<256x128xbf16>, vector<64x128xf32> -> vector<64x128xf32>
    %7 = arith.addf %3, %6 : vector<64x128xf32>
    %c0_6 = arith.constant 0 : index
    %c0_7 = arith.constant 0 : index
    %8 = vector.load %arg7[%c0_6, %c0_7] : memref<64x128xf32, #tpu.memory_space<vmem>>, vector<64x128xf32>
    tpu.vector_store %arg7[%c0_6, %c0_7], %7 {strides = array<i32>} : memref<64x128xf32, #tpu.memory_space<vmem>>, vector<64x128xf32>,
    %c0_i32_8 = arith.constant 0 : i32
    %9 = arith.cmpi eq, %arg2, %c0_i32_8 : i32
    %10 = arith.extui %9 : i1 to i32
    %c0_i32_9 = arith.constant 0 : i32
    %11 = arith.cmpi ne, %10, %c0_i32_9 : i32
    scf.if %11 {
      %c0_10 = arith.constant 0 : index
      %c0_11 = arith.constant 0 : index
      %12 = vector.load %arg7[%c0_10, %c0_11] : memref<64x128xf32, #tpu.memory_space<vmem>>, vector<64x128xf32>
      %13 = arith.truncf %12 : vector<64x128xf32> to vector<64x128xbf16>
      %c0_12 = arith.constant 0 : index
      %c0_13 = arith.constant 0 : index
      %14 = vector.load %arg5[%c0_12, %c0_13] : memref<64x128xbf16, #tpu.memory_space<vmem>>, vector<64x128xbf16>
      tpu.vector_store %arg5[%c0_12, %c0_13], %13 {strides = array<i32>} : memref<64x128xbf16, #tpu.memory_space<vmem>>, vector<64x128xbf16>,
      %cst_14 = arith.constant dense<0.000000e+00> : vector<128xf32>
      %15 = vector.multi_reduction <add>, %12, %cst_14 [0] : vector<64x128xf32> to vector<128xf32>
      %16 = vector.shape_cast %15 : vector<128xf32> to vector<1x128xf32>
      %17 = arith.mulf %12, %12 : vector<64x128xf32>
      %cst_15 = arith.constant dense<0.000000e+00> : vector<128xf32>
      %18 = vector.multi_reduction <add>, %17, %cst_15 [0] : vector<64x128xf32> to vector<128xf32>
      %19 = vector.shape_cast %18 : vector<128xf32> to vector<1x128xf32>
      %20 = tpu.iota {dimensions = array<i32: 0>} : vector<8x128xi32>
      %c4_i32 = arith.constant 4 : i32
      %21 = vector.broadcast %c4_i32 : i32 to vector<8x128xi32>
      %22 = arith.cmpi slt, %20, %21 : vector<8x128xi32>
      %23 = vector.shape_cast %16 : vector<1x128xf32> to vector<1x128xf32>
      %24 = vector.broadcast %23 : vector<1x128xf32> to vector<8x128xf32>
      %25 = vector.shape_cast %19 : vector<1x128xf32> to vector<1x128xf32>
      %26 = vector.broadcast %25 : vector<1x128xf32> to vector<8x128xf32>
      %27 = arith.select %22, %24, %26 : vector<8x128xi1>, vector<8x128xf32>
      %c0_16 = arith.constant 0 : index
      %c0_17 = arith.constant 0 : index
      %28 = vector.load %arg6[%c0_16, %c0_17] : memref<8x128xf32, #tpu.memory_space<vmem>>, vector<8x128xf32>
      tpu.vector_store %arg6[%c0_16, %c0_17], %27 {strides = array<i32>} : memref<8x128xf32, #tpu.memory_space<vmem>>, vector<8x128xf32>,
    } else {
    }
    return
  }
  func.func @transform_0(%arg0: i32, %arg1: i32, %arg2: i32) -> (i32, i32) {
    %c0_i32 = arith.constant 0 : i32
    return %arg0, %arg2 : i32, i32
  }
  func.func @transform_1(%arg0: i32, %arg1: i32, %arg2: i32) -> (i32, i32) {
    %c0_i32 = arith.constant 0 : i32
    return %arg2, %arg1 : i32, i32
  }
  func.func @transform_2(%arg0: i32, %arg1: i32, %arg2: i32) -> (i32, i32) {
    %c0_i32 = arith.constant 0 : i32
    return %arg0, %arg1 : i32, i32
  }
  func.func @transform_3(%arg0: i32, %arg1: i32, %arg2: i32) -> (i32, i32) {
    %c0_i32 = arith.constant 0 : i32
    return %arg0, %arg1 : i32, i32
  }
}

module attributes {stable_mosaic.version = 11 : i64} {
  func.func @_affine_leaky_kernel(%arg0: i32, %arg1: memref<64x128xbf16, #tpu.memory_space<vmem>>, %arg2: memref<1x128xf32, #tpu.memory_space<vmem>>, %arg3: memref<1x128xf32, #tpu.memory_space<vmem>>, %arg4: memref<64x128xbf16, #tpu.memory_space<vmem>>) attributes {dimension_semantics = [#tpu.dimension_semantics<parallel>], iteration_bounds = array<i64: 2>, scalar_prefetch = 0 : i64, scratch_operands = 0 : i64, tpu.core_type = #tpu.core_type<tc>, window_params = [{transform_indices = @transform_0, window_bounds = array<i64: 64, 128>}, {pipeline_mode = #tpu.pipeline_mode<synchronous>, transform_indices = @transform_1, window_bounds = array<i64: 1, 128>}, {pipeline_mode = #tpu.pipeline_mode<synchronous>, transform_indices = @transform_2, window_bounds = array<i64: 1, 128>}, {transform_indices = @transform_3, window_bounds = array<i64: 64, 128>}]} {
    %c0 = arith.constant 0 : index
    %c0_0 = arith.constant 0 : index
    %0 = vector.load %arg1[%c0, %c0_0] : memref<64x128xbf16, #tpu.memory_space<vmem>>, vector<64x128xbf16>
    %1 = arith.extf %0 : vector<64x128xbf16> to vector<64x128xf32>
    %c0_1 = arith.constant 0 : index
    %c0_2 = arith.constant 0 : index
    %2 = vector.load %arg2[%c0_1, %c0_2] : memref<1x128xf32, #tpu.memory_space<vmem>>, vector<1x128xf32>
    %3 = vector.broadcast %2 : vector<1x128xf32> to vector<64x128xf32>
    %4 = arith.mulf %1, %3 : vector<64x128xf32>
    %c0_3 = arith.constant 0 : index
    %c0_4 = arith.constant 0 : index
    %5 = vector.load %arg3[%c0_3, %c0_4] : memref<1x128xf32, #tpu.memory_space<vmem>>, vector<1x128xf32>
    %6 = vector.broadcast %5 : vector<1x128xf32> to vector<64x128xf32>
    %7 = arith.addf %4, %6 : vector<64x128xf32>
    %cst = arith.constant 0.000000e+00 : f32
    %8 = vector.broadcast %cst : f32 to vector<64x128xf32>
    %9 = arith.cmpf ogt, %7, %8 : vector<64x128xf32>
    %cst_5 = arith.constant 2.000000e-01 : f32
    %10 = vector.broadcast %cst_5 : f32 to vector<64x128xf32>
    %11 = arith.mulf %10, %7 : vector<64x128xf32>
    %12 = arith.select %9, %7, %11 : vector<64x128xi1>, vector<64x128xf32>
    %13 = arith.truncf %12 : vector<64x128xf32> to vector<64x128xbf16>
    %c0_6 = arith.constant 0 : index
    %c0_7 = arith.constant 0 : index
    %14 = vector.load %arg4[%c0_6, %c0_7] : memref<64x128xbf16, #tpu.memory_space<vmem>>, vector<64x128xbf16>
    tpu.vector_store %arg4[%c0_6, %c0_7], %13 {strides = array<i32>} : memref<64x128xbf16, #tpu.memory_space<vmem>>, vector<64x128xbf16>,
    return
  }
  func.func @transform_0(%arg0: i32) -> (i32, i32) {
    %c0_i32 = arith.constant 0 : i32
    %c0_i32_0 = arith.constant 0 : i32
    return %arg0, %c0_i32 : i32, i32
  }
  func.func @transform_1(%arg0: i32) -> (i32, i32) {
    %c0_i32 = arith.constant 0 : i32
    %c0_i32_0 = arith.constant 0 : i32
    %c0_i32_1 = arith.constant 0 : i32
    return %c0_i32, %c0_i32_0 : i32, i32
  }
  func.func @transform_2(%arg0: i32) -> (i32, i32) {
    %c0_i32 = arith.constant 0 : i32
    %c0_i32_0 = arith.constant 0 : i32
    %c0_i32_1 = arith.constant 0 : i32
    return %c0_i32, %c0_i32_0 : i32, i32
  }
  func.func @transform_3(%arg0: i32) -> (i32, i32) {
    %c0_i32 = arith.constant 0 : i32
    %c0_i32_0 = arith.constant 0 : i32
    return %arg0, %c0_i32 : i32, i32
  }
}

</mosaic_0001>

<llo_original>
// kernel: discriminator_forward.3
$region0: #{discriminator_forward.3}
  #allocation0 [shape = 'u32[]', space=smem, size = 0x4, offset = 0x4, fixed_abs, tag = 'smem constant byte address 0x4 - core index']
  #allocation1 [shape = 'u32[144,128]{1,0:T(1,128)}', space=vmem, size = 0x12000, scoped, tag = 'internal scratch']
  #allocation2 [shape = 'f32[256,128]{1,0:T(8,128)}', space=vmem, size = 0x20000, scoped, tag = 'scratch operand']
  %s0 = inlined_call_operand.vmem [shape: bf16[512,128], index: 0, kind: input, shape index: {}]
  %s1 = inlined_call_operand.vmem [shape: bf16[128,128], index: 1, kind: input, shape index: {}]
  %s2 = inlined_call_operand.vmem [shape: bf16[512,128], index: 2, kind: output, shape index: {}]
  %s3 = sld [smem:[#allocation0]]
  $region49: #{discriminator_forward.3} parent=0
    _
  %s5 = ssub.s32 1, %s3
  %s6 = scalar_select 0, %s5, %s3
  loop: start=0, step=1, limit=4
  $region2: #{discriminator_forward.3} parent=0 // loop_pre_header
    _
  $region3: #{discriminator_forward.3} parent=0 // loop_header
    %s8 = sphi 0, %s12
    %p9 = scmp.ge.s32.totalorder %s8, 4
    %s15 = sphi 0, %s34
    %s16 = sphi 0, %s30
    %s17 = sphi 0, %s26
    %s18 = sphi 0, %s15
    %s19 = sphi 0, %s16
    %s20 = sphi 0, %s17
    %s21 = sphi 0, %s18
    %s22 = sphi 0, %s19
    %s23 = sphi 0, %s20
    %s39 = sphi 0, %s41
    %s42 = sphi 0, %s39
    %s43 = sphi 0, %s42
    %s59 = sphi 0, %s43
    %s67 = sphi 0, %s69
    %s70 = sphi 0, %s67
    %s71 = sphi 0, %s70
    %s87 = sphi 0, %s71
    %s95 = sphi 0, %s97
    %s98 = sphi 0, %s95
    %s99 = sphi 0, %s98
    %s115 = sphi 0, %s99
  $region4: #{discriminator_forward.3} parent=0 // loop_header_branch
    %11 = sbr.rel (%p9) target = $region8
  $region5: #{discriminator_forward.3} parent=0 // loop_body
    %s13 = ssub.s32 %s8, 1
    %s14 = ssub.s32 %s8, 2
    %s24 = sadd.s32 1, %s17
    %p25 = scmp.ge.s32.totalorder %s24, 1
    %s26 = scalar_select %p25, 0, %s24
    %s27 = sadd.s32 1, %s16
    %s28 = scalar_select %p25, %s27, %s16
    %p29 = scmp.ge.s32.totalorder %s28, 1
    %s30 = scalar_select %p29, 0, %s28
    %s31 = sadd.s32 1, %s15
    %s32 = scalar_select %p29, %s31, %s15
    %p33 = scmp.ge.s32.totalorder %s32, 2
    %s34 = scalar_select %p33, 0, %s32
    %s35 = ssub.s32 %s15, %s34
    %s36 = ssub.s32 %s17, %s26
    %s37 = sor.u32 %s35, %s36
    %p38 = scmp.eq.s32.totalorder %s37, 0
    %s40 = sadd.s32 %s39, 1
    %s41 = scalar_select %p38, %s39, %s40
    %p44 = pneg %p38
    %p45 = scmp.eq.s32.totalorder %s8, 1
    %p46 = por %p44, %p45
    %p47 = scmp.ne.s32.totalorder %s39, %s42
    %p48 = scmp.eq.s32.totalorder %s8, 0
    %p49 = por %p47, %p48
    %p50 = scmp.ne.s32.totalorder %s39, %s42
    %p51 = scmp.eq.s32.totalorder %s13, 1
    %p52 = por %p50, %p51
    %p53 = scmp.ne.s32.totalorder %s42, %s43
    %p54 = scmp.eq.s32.totalorder %s13, 0
    %p55 = por %p53, %p54
    %p56 = scmp.ne.s32.totalorder %s42, %s43
    %p57 = scmp.eq.s32.totalorder %s14, 1
    %p58 = por %p56, %p57
    %p60 = scmp.ne.s32.totalorder %s43, %s59
    %p61 = scmp.eq.s32.totalorder %s14, 0
    %p62 = por %p60, %p61
    %s63 = ssub.s32 %s17, %s26
    %s64 = ssub.s32 %s16, %s30
    %s65 = sor.u32 %s63, %s64
    %p66 = scmp.eq.s32.totalorder %s65, 0
    %s68 = sadd.s32 %s67, 1
    %s69 = scalar_select %p66, %s67, %s68
    %p72 = pneg %p66
    %p73 = scmp.eq.s32.totalorder %s8, 1
    %p74 = por %p72, %p73
    %p75 = scmp.ne.s32.totalorder %s67, %s70
    %p76 = scmp.eq.s32.totalorder %s8, 0
    %p77 = por %p75, %p76
    %p78 = scmp.ne.s32.totalorder %s67, %s70
    %p79 = scmp.eq.s32.totalorder %s13, 1
    %p80 = por %p78, %p79
    %p81 = scmp.ne.s32.totalorder %s70, %s71
    %p82 = scmp.eq.s32.totalorder %s13, 0
    %p83 = por %p81, %p82
    %p84 = scmp.ne.s32.totalorder %s70, %s71
    %p85 = scmp.eq.s32.totalorder %s14, 1
    %p86 = por %p84, %p85
    %p88 = scmp.ne.s32.totalorder %s71, %s87
    %p89 = scmp.eq.s32.totalorder %s14, 0
    %p90 = por %p88, %p89
    %s91 = ssub.s32 %s15, %s34
    %s92 = ssub.s32 %s16, %s30
    %s93 = sor.u32 %s91, %s92
    %p94 = scmp.eq.s32.totalorder %s93, 0
    %s96 = sadd.s32 %s95, 1
    %s97 = scalar_select %p94, %s95, %s96
    %p100 = pneg %p94
    %p101 = scmp.eq.s32.totalorder %s8, 1
    %p102 = por %p100, %p101
    %p103 = scmp.ne.s32.totalorder %s95, %s98
    %p104 = scmp.eq.s32.totalorder %s8, 0
    %p105 = por %p103, %p104
    %p106 = scmp.ne.s32.totalorder %s95, %s98
    %p107 = scmp.eq.s32.totalorder %s13, 1
    %p108 = por %p106, %p107
    %p109 = scmp.ne.s32.totalorder %s98, %s99
    %p110 = scmp.eq.s32.totalorder %s13, 0
    %p111 = por %p109, %p110
    %p112 = scmp.ne.s32.totalorder %s98, %s99
    %p113 = scmp.eq.s32.totalorder %s14, 1
    %p114 = por %p112, %p113
    %p116 = scmp.ne.s32.totalorder %s99, %s115
    %p117 = scmp.eq.s32.totalorder %s14, 0
    %p118 = por %p116, %p117
    %p119 = scmp.le.s32.totalorder 1, %s8
    %p120 = scmp.lt.s32.totalorder %s8, 3
    %p121 = pnand %p119, %p120
    %p122 = pneg %p121
    // Predicated region
    $region9: #{discriminator_forward.3} parent=5 // pred_check
      _
    $region10: #{discriminator_forward.3} parent=5 // pred_check_branch
      %124 = sbr.rel (%p121) target = $region12
    $region11: #{discriminator_forward.3} parent=5 // pred_region
      %s125 = ssub.s32 %s8, 1
      // Predicated region
      $region13: #{discriminator_forward.3} parent=11 // pred_check
        %p126 = pneg %p83
      $region14: #{discriminator_forward.3} parent=11 // pred_check_branch
        %128 = sbr.rel (%p126) target = $region16
      $region15: #{discriminator_forward.3} parent=11 // pred_region
        %s129 = smul.u32 16, %s20
        %p130 = scmp.lt.s32.totalorder %s129, 15
        %s131 = scalar_select %p130, %s129, 15
        %p132 = scmp.lt.s32.totalorder %s19, 0
        %s133 = scalar_select %p132, %s19, 0
        %s134 = sadd.s32 %s133, %s131
        %s135 = smul.addr %s134, 4
        %s136 = scalar_lea.vmem %s1, %s135
        %s137 = smul.u32 16, %s20
      $region16: #{discriminator_forward.3} parent=11 // pred_fallthru
        _
    $region12: #{discriminator_forward.3} parent=5 // pred_fallthru
      _
    %p138 = scmp.lt.s32.totalorder %s8, 2
    // Predicated region
    $region17: #{discriminator_forward.3} parent=5 // pred_check
      %p139 = pneg %p138
    $region18: #{discriminator_forward.3} parent=5 // pred_check_branch
      %141 = sbr.rel (%p139) target = $region20
    $region19: #{discriminator_forward.3} parent=5 // pred_region
      // Predicated region
      $region21: #{discriminator_forward.3} parent=19 // pred_check
        %p142 = pneg %p49
      $region22: #{discriminator_forward.3} parent=19 // pred_check_branch
        %144 = sbr.rel (%p142) target = $region24
      $region23: #{discriminator_forward.3} parent=19 // pred_region
        %s145 = smul.u32 32, %s15
        %p146 = scmp.lt.s32.totalorder %s145, 63
        %s147 = scalar_select %p146, %s145, 63
        %p148 = scmp.lt.s32.totalorder %s17, 0
        %s149 = scalar_select %p148, %s17, 0
        %s150 = sadd.s32 %s149, %s147
        %s151 = smul.addr %s150, 4
        %s152 = scalar_lea.vmem %s0, %s151
        %s153 = smul.u32 32, %s15
      $region24: #{discriminator_forward.3} parent=19 // pred_fallthru
        _
    $region20: #{discriminator_forward.3} parent=5 // pred_fallthru
      _
    %p154 = scmp.le.s32.totalorder 1, %s8
    %p155 = scmp.lt.s32.totalorder %s8, 3
    %p156 = pnand %p154, %p155
    %p157 = pneg %p156
    // Predicated region
    $region25: #{discriminator_forward.3} parent=5 // pred_check
      _
    $region26: #{discriminator_forward.3} parent=5 // pred_check_branch
      %159 = sbr.rel (%p156) target = $region28
    $region27: #{discriminator_forward.3} parent=5 // pred_region
      %s160 = ssub.s32 %s8, 1
      %s161 = smul.u32 32, %s18
      %p162 = scmp.lt.s32.totalorder %s161, 63
      %s163 = scalar_select %p162, %s161, 63
      %p164 = scmp.lt.s32.totalorder %s20, 0
      %s165 = scalar_select %p164, %s20, 0
      %s166 = sadd.s32 %s165, %s163
      %s167 = smul.addr %s166, 4
      %s168 = scalar_lea.vmem %s0, %s167
      %p169 = pneg %p55
      %p170 = pneg %p52
      %s171 = smul.u32 16, %s20
      %p172 = scmp.lt.s32.totalorder %s171, 15
      %s173 = scalar_select %p172, %s171, 15
      %p174 = scmp.lt.s32.totalorder %s19, 0
      %s175 = scalar_select %p174, %s19, 0
      %s176 = sadd.s32 %s175, %s173
      %s177 = smul.addr %s176, 4
      %s178 = scalar_lea.vmem %s1, %s177
      %p179 = pneg %p83
      %p180 = pneg %p80
      %p181 = pneg %p111
      %p182 = pneg %p108
      %s183 = smul.u32 32, %s18
      %p184 = scmp.lt.s32.totalorder %s183, 63
      %s185 = scalar_select %p184, %s183, 63
      %p186 = scmp.lt.s32.totalorder %s19, 0
      %s187 = scalar_select %p186, %s19, 0
      %s188 = sadd.s32 %s187, %s185
      %s189 = smul.addr %s188, 4
      %s190 = scalar_lea.vmem %s2, %s189
      %s191 = smul.u32 32, %s18
      %p192 = scmp.lt.s32.totalorder %s191, 63
      %s193 = scalar_select %p192, %s191, 63
      %p194 = scmp.lt.s32.totalorder %s20, 0
      %s195 = scalar_select %p194, %s20, 0
      %s196 = sadd.s32 %s195, %s193
      %s197 = smul.addr %s196, 4
      %s198 = scalar_lea.vmem %s0, %s197
      %s199 = smul.u32 32, %s18
      %s200 = smul.u32 16, %s20
      %p201 = scmp.lt.s32.totalorder %s200, 15
      %s202 = scalar_select %p201, %s200, 15
      %p203 = scmp.lt.s32.totalorder %s19, 0
      %s204 = scalar_select %p203, %s19, 0
      %s205 = sadd.s32 %s204, %s202
      %s206 = smul.addr %s205, 4
      %s207 = scalar_lea.vmem %s1, %s206
      %s208 = smul.u32 16, %s20
      %s209 = smul.u32 32, %s18
      %p210 = scmp.lt.s32.totalorder %s209, 63
      %s211 = scalar_select %p210, %s209, 63
      %p212 = scmp.lt.s32.totalorder %s19, 0
      %s213 = scalar_select %p212, %s19, 0
      %s214 = sadd.s32 %s213, %s211
      %s215 = smul.addr %s214, 4
      %s216 = scalar_lea.vmem %s2, %s215
      %s217 = smul.u32 32, %s18
      %p219 = scmp.eq.s32.totalorder %s20, 0
      // Predicated region
      $region29: #{discriminator_forward.3} parent=27 // pred_check
        %p220 = pneg %p219
      $region30: #{discriminator_forward.3} parent=27 // pred_check_branch
        %222 = sbr.rel (%p220) target = $region32
      $region31: #{discriminator_forward.3} parent=27 // pred_region
        %223 = vst [vmem:[#allocation2] sm:$0xff] 0.0
        %224 = vst [vmem:[#allocation2 + $0x8] sm:$0xff] 0.0
        %225 = vst [vmem:[#allocation2 + $0x10] sm:$0xff] 0.0
        %226 = vst [vmem:[#allocation2 + $0x18] sm:$0xff] 0.0
        %227 = vst [vmem:[#allocation2 + $0x20] sm:$0xff] 0.0
        %228 = vst [vmem:[#allocation2 + $0x28] sm:$0xff] 0.0
        %229 = vst [vmem:[#allocation2 + $0x30] sm:$0xff] 0.0
        %230 = vst [vmem:[#allocation2 + $0x38] sm:$0xff] 0.0
        %231 = vst [vmem:[#allocation2 + $0x40] sm:$0xff] 0.0
        %232 = vst [vmem:[#allocation2 + $0x48] sm:$0xff] 0.0
        %233 = vst [vmem:[#allocation2 + $0x50] sm:$0xff] 0.0
        %234 = vst [vmem:[#allocation2 + $0x58] sm:$0xff] 0.0
        %235 = vst [vmem:[#allocation2 + $0x60] sm:$0xff] 0.0
        %236 = vst [vmem:[#allocation2 + $0x68] sm:$0xff] 0.0
        %237 = vst [vmem:[#allocation2 + $0x70] sm:$0xff] 0.0
        %238 = vst [vmem:[#allocation2 + $0x78] sm:$0xff] 0.0
        %239 = vst [vmem:[#allocation2 + $0x80] sm:$0xff] 0.0
        %240 = vst [vmem:[#allocation2 + $0x88] sm:$0xff] 0.0
        %241 = vst [vmem:[#allocation2 + $0x90] sm:$0xff] 0.0
        %242 = vst [vmem:[#allocation2 + $0x98] sm:$0xff] 0.0
        %243 = vst [vmem:[#allocation2 + $0xa0] sm:$0xff] 0.0
        %244 = vst [vmem:[#allocation2 + $0xa8] sm:$0xff] 0.0
        %245 = vst [vmem:[#allocation2 + $0xb0] sm:$0xff] 0.0
        %246 = vst [vmem:[#allocation2 + $0xb8] sm:$0xff] 0.0
        %247 = vst [vmem:[#allocation2 + $0xc0] sm:$0xff] 0.0
        %248 = vst [vmem:[#allocation2 + $0xc8] sm:$0xff] 0.0
        %249 = vst [vmem:[#allocation2 + $0xd0] sm:$0xff] 0.0
        %250 = vst [vmem:[#allocation2 + $0xd8] sm:$0xff] 0.0
        %251 = vst [vmem:[#allocation2 + $0xe0] sm:$0xff] 0.0
        %252 = vst [vmem:[#allocation2 + $0xe8] sm:$0xff] 0.0
        %253 = vst [vmem:[#allocation2 + $0xf0] sm:$0xff] 0.0
        %254 = vst [vmem:[#allocation2 + $0xf8] sm:$0xff] 0.0
      $region32: #{discriminator_forward.3} parent=27 // pred_fallthru
        _
      %v255 = vld [vmem:[#allocation2] sm:$0xff]
      %v256 = vld [vmem:[#allocation2 + $0x8] sm:$0xff]
      %v257 = vld [vmem:[#allocation2 + $0x10] sm:$0xff]
      %v258 = vld [vmem:[#allocation2 + $0x18] sm:$0xff]
      %v259 = vld [vmem:[#allocation2 + $0x20] sm:$0xff]
      %v260 = vld [vmem:[#allocation2 + $0x28] sm:$0xff]
      %v261 = vld [vmem:[#allocation2 + $0x30] sm:$0xff]
      %v262 = vld [vmem:[#allocation2 + $0x38] sm:$0xff]
      %v263 = vld [vmem:[#allocation2 + $0x40] sm:$0xff]
      %v264 = vld [vmem:[#allocation2 + $0x48] sm:$0xff]
      %v265 = vld [vmem:[#allocation2 + $0x50] sm:$0xff]
      %v266 = vld [vmem:[#allocation2 + $0x58] sm:$0xff]
      %v267 = vld [vmem:[#allocation2 + $0x60] sm:$0xff]
      %v268 = vld [vmem:[#allocation2 + $0x68] sm:$0xff]
      %v269 = vld [vmem:[#allocation2 + $0x70] sm:$0xff]
      %v270 = vld [vmem:[#allocation2 + $0x78] sm:$0xff]
      %v271 = vld [vmem:[#allocation2 + $0x80] sm:$0xff]
      %v272 = vld [vmem:[#allocation2 + $0x88] sm:$0xff]
      %v273 = vld [vmem:[#allocation2 + $0x90] sm:$0xff]
      %v274 = vld [vmem:[#allocation2 + $0x98] sm:$0xff]
      %v275 = vld [vmem:[#allocation2 + $0xa0] sm:$0xff]
      %v276 = vld [vmem:[#allocation2 + $0xa8] sm:$0xff]
      %v277 = vld [vmem:[#allocation2 + $0xb0] sm:$0xff]
      %v278 = vld [vmem:[#allocation2 + $0xb8] sm:$0xff]
      %v279 = vld [vmem:[#allocation2 + $0xc0] sm:$0xff]
      %v280 = vld [vmem:[#allocation2 + $0xc8] sm:$0xff]
      %v281 = vld [vmem:[#allocation2 + $0xd0] sm:$0xff]
      %v282 = vld [vmem:[#allocation2 + $0xd8] sm:$0xff]
      %v283 = vld [vmem:[#allocation2 + $0xe0] sm:$0xff]
      %v284 = vld [vmem:[#allocation2 + $0xe8] sm:$0xff]
      %v285 = vld [vmem:[#allocation2 + $0xf0] sm:$0xff]
      %v286 = vld [vmem:[#allocation2 + $0xf8] sm:$0xff]
      %v287 = vld [vmem:[%s198] sm:$0xf]
      %v288 = vld [vmem:[%s198 + $0x4] sm:$0xf]
      %v289 = vld [vmem:[%s198 + $0x8] sm:$0xf]
      %v290 = vld [vmem:[%s198 + $0xc] sm:$0xf]
      %v291 = vld [vmem:[%s198 + $0x10] sm:$0xf]
      %v292 = vld [vmem:[%s198 + $0x14] sm:$0xf]
      %v293 = vld [vmem:[%s198 + $0x18] sm:$0xf]
      %v294 = vld [vmem:[%s198 + $0x1c] sm:$0xf]
      %v295 = vld [vmem:[%s198 + $0x20] sm:$0xf]
      %v296 = vld [vmem:[%s198 + $0x24] sm:$0xf]
      %v297 = vld [vmem:[%s198 + $0x28] sm:$0xf]
      %v298 = vld [vmem:[%s198 + $0x2c] sm:$0xf]
      %v299 = vld [vmem:[%s198 + $0x30] sm:$0xf]
      %v300 = vld [vmem:[%s198 + $0x34] sm:$0xf]
      %v301 = vld [vmem:[%s198 + $0x38] sm:$0xf]
      %v302 = vld [vmem:[%s198 + $0x3c] sm:$0xf]
      %v303 = vld [vmem:[%s198 + $0x40] sm:$0xf]
      %v304 = vld [vmem:[%s198 + $0x44] sm:$0xf]
      %v305 = vld [vmem:[%s198 + $0x48] sm:$0xf]
      %v306 = vld [vmem:[%s198 + $0x4c] sm:$0xf]
      %v307 = vld [vmem:[%s198 + $0x50] sm:$0xf]
      %v308 = vld [vmem:[%s198 + $0x54] sm:$0xf]
      %v309 = vld [vmem:[%s198 + $0x58] sm:$0xf]
      %v310 = vld [vmem:[%s198 + $0x5c] sm:$0xf]
      %v311 = vld [vmem:[%s198 + $0x60] sm:$0xf]
      %v312 = vld [vmem:[%s198 + $0x64] sm:$0xf]
      %v313 = vld [vmem:[%s198 + $0x68] sm:$0xf]
      %v314 = vld [vmem:[%s198 + $0x6c] sm:$0xf]
      %v315 = vld [vmem:[%s198 + $0x70] sm:$0xf]
      %v316 = vld [vmem:[%s198 + $0x74] sm:$0xf]
      %v317 = vld [vmem:[%s198 + $0x78] sm:$0xf]
      %v318 = vld [vmem:[%s198 + $0x7c] sm:$0xf]
      %v319 = vld [vmem:[%s207] sm:$0xf]
      %v320 = vld [vmem:[%s207 + $0x4] sm:$0xf]
      %v321 = vld [vmem:[%s207 + $0x8] sm:$0xf]
      %v322 = vld [vmem:[%s207 + $0xc] sm:$0xf]
      %v323 = vld [vmem:[%s207 + $0x10] sm:$0xf]
      %v324 = vld [vmem:[%s207 + $0x14] sm:$0xf]
      %v325 = vld [vmem:[%s207 + $0x18] sm:$0xf]
      %v326 = vld [vmem:[%s207 + $0x1c] sm:$0xf]
      %v327 = vld [vmem:[%s207 + $0x20] sm:$0xf]
      %v328 = vld [vmem:[%s207 + $0x24] sm:$0xf]
      %v329 = vld [vmem:[%s207 + $0x28] sm:$0xf]
      %v330 = vld [vmem:[%s207 + $0x2c] sm:$0xf]
      %v331 = vld [vmem:[%s207 + $0x30] sm:$0xf]
      %v332 = vld [vmem:[%s207 + $0x34] sm:$0xf]
      %v333 = vld [vmem:[%s207 + $0x38] sm:$0xf]
      %v334 = vld [vmem:[%s207 + $0x3c] sm:$0xf]
      %v367 = vunpack.c.l.b16 %v287
      %v368 = vunpack.c.l.b16 %v288
      %v369 = vunpack.c.l.b16 %v289
      %v370 = vunpack.c.l.b16 %v290
      %v371 = vunpack.c.l.b16 %v291
      %v372 = vunpack.c.l.b16 %v292
      %v373 = vunpack.c.l.b16 %v293
      %v374 = vunpack.c.l.b16 %v294
      %v375 = vunpack.c.l.b16 %v295
      %v376 = vunpack.c.l.b16 %v296
      %v377 = vunpack.c.l.b16 %v297
      %v378 = vunpack.c.l.b16 %v298
      %v379 = vunpack.c.l.b16 %v299
      %v380 = vunpack.c.l.b16 %v300
      %v381 = vunpack.c.l.b16 %v301
      %v382 = vunpack.c.l.b16 %v302
      %v383 = vunpack.c.l.b16 %v303
      %v384 = vunpack.c.l.b16 %v304
      %v385 = vunpack.c.l.b16 %v305
      %v386 = vunpack.c.l.b16 %v306
      %v387 = vunpack.c.l.b16 %v307
      %v388 = vunpack.c.l.b16 %v308
      %v389 = vunpack.c.l.b16 %v309
      %v390 = vunpack.c.l.b16 %v310
      %v391 = vunpack.c.l.b16 %v311
      %v392 = vunpack.c.l.b16 %v312
      %v393 = vunpack.c.l.b16 %v313
      %v394 = vunpack.c.l.b16 %v314
      %v395 = vunpack.c.l.b16 %v315
      %v396 = vunpack.c.l.b16 %v316
      %v397 = vunpack.c.l.b16 %v317
      %v398 = vunpack.c.l.b16 %v318
      %v399 = vpack.c.b16 %v368, %v367
      %v400 = vpack.c.b16 %v370, %v369
      %v401 = vpack.c.b16 %v372, %v371
      %v402 = vpack.c.b16 %v374, %v373
      %v403 = vpack.c.b16 %v376, %v375
      %v404 = vpack.c.b16 %v378, %v377
      %v405 = vpack.c.b16 %v380, %v379
      %v406 = vpack.c.b16 %v382, %v381
      %v407 = vpack.c.b16 %v384, %v383
      %v408 = vpack.c.b16 %v386, %v385
      %v409 = vpack.c.b16 %v388, %v387
      %v410 = vpack.c.b16 %v390, %v389
      %v411 = vpack.c.b16 %v392, %v391
      %v412 = vpack.c.b16 %v394, %v393
      %v413 = vpack.c.b16 %v396, %v395
      %v414 = vpack.c.b16 %v398, %v397
      %v447 = vunpack.c.l.b16 %v319
      %v448 = vunpack.c.l.b16 %v320
      %v449 = vunpack.c.l.b16 %v321
      %v450 = vunpack.c.l.b16 %v322
      %v451 = vunpack.c.l.b16 %v323
      %v452 = vunpack.c.l.b16 %v324
      %v453 = vunpack.c.l.b16 %v325
      %v454 = vunpack.c.l.b16 %v326
      %v455 = vunpack.c.l.b16 %v327
      %v456 = vunpack.c.l.b16 %v328
      %v457 = vunpack.c.l.b16 %v329
      %v458 = vunpack.c.l.b16 %v330
      %v459 = vunpack.c.l.b16 %v331
      %v460 = vunpack.c.l.b16 %v332
      %v461 = vunpack.c.l.b16 %v333
      %v462 = vunpack.c.l.b16 %v334
      %v463 = vpack.c.b16 %v448, %v447
      %v464 = vpack.c.b16 %v450, %v449
      %v465 = vpack.c.b16 %v452, %v451
      %v466 = vpack.c.b16 %v454, %v453
      %v467 = vpack.c.b16 %v456, %v455
      %v468 = vpack.c.b16 %v458, %v457
      %v469 = vpack.c.b16 %v460, %v459
      %v470 = vpack.c.b16 %v462, %v461
      %479 = vmatprep.subr.bf16.mxu0 0
      %480 = vmatpush1.bf16.msra.mxu0 %v463
      %481 = vmatprep.subr.bf16.mxu0 0
      %482 = vmatpush1.bf16.msra.mxu0 %v464
      %483 = vmatprep.subr.bf16.mxu0 0
      %484 = vmatpush1.bf16.msra.mxu0 %v465
      %485 = vmatprep.subr.bf16.mxu0 0
      %486 = vmatpush1.bf16.msra.mxu0 %v466
      %487 = vmatprep.subr.bf16.mxu0 0
      %488 = vmatpush1.bf16.msra.mxu0 %v467
      %489 = vmatprep.subr.bf16.mxu0 0
      %490 = vmatpush1.bf16.msra.mxu0 %v468
      %491 = vmatprep.subr.bf16.mxu0 0
      %492 = vmatpush1.bf16.msra.mxu0 %v469
      %493 = vmatprep.subr.bf16.mxu0 0
      %494 = vmatpush1.bf16.msra.mxu0 %v470
      %495 = vmatprep.subr.bf16.mxu0 0
      %496 = vmatpush1.bf16.msra.mxu0 0
      %497 = vmatprep.subr.bf16.mxu0 0
      %498 = vmatpush1.bf16.msra.mxu0 0
      %499 = vmatprep.subr.bf16.mxu0 0
      %500 = vmatpush1.bf16.msra.mxu0 0
      %501 = vmatprep.subr.bf16.mxu0 0
      %502 = vmatpush1.bf16.msra.mxu0 0
      %503 = vmatprep.subr.bf16.mxu0 0
      %504 = vmatpush1.bf16.msra.mxu0 0
      %505 = vmatprep.subr.bf16.mxu0 0
      %506 = vmatpush1.bf16.msra.mxu0 0
      %507 = vmatprep.subr.bf16.mxu0 0
      %508 = vmatpush1.bf16.msra.mxu0 0
      %509 = vmatprep.subr.bf16.mxu0 0
      %510 = vmatpush1.bf16.msra.mxu0 0
      %511 = vmatprep.mubr.bf16.mxu0 0
      %512 = vmatmul.mubr.bf16.gmra.mrb[0].mxu0 %v399
      %v513 = vpop.f32.mrb[0].mxu0
      %v514 = vadd.f32 0.0, %v513
      %v515 = vpop.f32.mrb[0].mxu0
      %v516 = vpop.f32.mrb[0].mxu0
      %v517 = vadd.f32 0.0, %v516
      %v518 = vpop.f32.mrb[0].mxu0
      %519 = vmatprep.mubr.bf16.mxu0 0
      %520 = vmatmul.mubr.bf16.gmra.mrb[0].mxu0 %v400
      %v521 = vpop.f32.mrb[0].mxu0
      %v522 = vadd.f32 0.0, %v521
      %v523 = vpop.f32.mrb[0].mxu0
      %v524 = vpop.f32.mrb[0].mxu0
      %v525 = vadd.f32 0.0, %v524
      %v526 = vpop.f32.mrb[0].mxu0
      %527 = vmatprep.mubr.bf16.mxu0 0
      %528 = vmatmul.mubr.bf16.gmra.mrb[0].mxu0 %v401
      %v529 = vpop.f32.mrb[0].mxu0
      %v530 = vadd.f32 0.0, %v529
      %v531 = vpop.f32.mrb[0].mxu0
      %v532 = vpop.f32.mrb[0].mxu0
      %v533 = vadd.f32 0.0, %v532
      %v534 = vpop.f32.mrb[0].mxu0
      %535 = vmatprep.mubr.bf16.mxu0 0
      %536 = vmatmul.mubr.bf16.gmra.mrb[0].mxu0 %v402
      %v537 = vpop.f32.mrb[0].mxu0
      %v538 = vadd.f32 0.0, %v537
      %v539 = vpop.f32.mrb[0].mxu0
      %v540 = vpop.f32.mrb[0].mxu0
      %v541 = vadd.f32 0.0, %v540
      %v542 = vpop.f32.mrb[0].mxu0
      %543 = vmatprep.mubr.bf16.mxu0 0
      %544 = vmatmul.mubr.bf16.gmra.mrb[0].mxu0 %v403
      %v545 = vpop.f32.mrb[0].mxu0
      %v546 = vadd.f32 0.0, %v545
      %v547 = vpop.f32.mrb[0].mxu0
      %v548 = vpop.f32.mrb[0].mxu0
      %v549 = vadd.f32 0.0, %v548
      %v550 = vpop.f32.mrb[0].mxu0
      %551 = vmatprep.mubr.bf16.mxu0 0
      %552 = vmatmul.mubr.bf16.gmra.mrb[0].mxu0 %v404
      %v553 = vpop.f32.mrb[0].mxu0
      %v554 = vadd.f32 0.0, %v553
      %v555 = vpop.f32.mrb[0].mxu0
      %v556 = vpop.f32.mrb[0].mxu0
      %v557 = vadd.f32 0.0, %v556
      %v558 = vpop.f32.mrb[0].mxu0
      %559 = vmatprep.mubr.bf16.mxu0 0
      %560 = vmatmul.mubr.bf16.gmra.mrb[0].mxu0 %v405
      %v561 = vpop.f32.mrb[0].mxu0
      %v562 = vadd.f32 0.0, %v561
      %v563 = vpop.f32.mrb[0].mxu0
      %v564 = vpop.f32.mrb[0].mxu0
      %v565 = vadd.f32 0.0, %v564
      %v566 = vpop.f32.mrb[0].mxu0
      %567 = vmatprep.mubr.bf16.mxu0 0
      %568 = vmatmul.mubr.bf16.gmra.mrb[0].mxu0 %v406
      %v569 = vpop.f32.mrb[0].mxu0
      %v570 = vadd.f32 0.0, %v569
      %v571 = vpop.f32.mrb[0].mxu0
      %v572 = vpop.f32.mrb[0].mxu0
      %v573 = vadd.f32 0.0, %v572
      %v574 = vpop.f32.mrb[0].mxu0
      %575 = vmatprep.mubr.bf16.mxu0 0
      %576 = vmatmul.mubr.bf16.gmra.mrb[0].mxu0 %v407
      %v577 = vpop.f32.mrb[0].mxu0
      %v578 = vadd.f32 0.0, %v577
      %v579 = vpop.f32.mrb[0].mxu0
      %v580 = vpop.f32.mrb[0].mxu0
      %v581 = vadd.f32 0.0, %v580
      %v582 = vpop.f32.mrb[0].mxu0
      %583 = vmatprep.mubr.bf16.mxu0 0
      %584 = vmatmul.mubr.bf16.gmra.mrb[0].mxu0 %v408
      %v585 = vpop.f32.mrb[0].mxu0
      %v586 = vadd.f32 0.0, %v585
      %v587 = vpop.f32.mrb[0].mxu0
      %v588 = vpop.f32.mrb[0].mxu0
      %v589 = vadd.f32 0.0, %v588
      %v590 = vpop.f32.mrb[0].mxu0
      %591 = vmatprep.mubr.bf16.mxu0 0
      %592 = vmatmul.mubr.bf16.gmra.mrb[0].mxu0 %v409
      %v593 = vpop.f32.mrb[0].mxu0
      %v594 = vadd.f32 0.0, %v593
      %v595 = vpop.f32.mrb[0].mxu0
      %v596 = vpop.f32.mrb[0].mxu0
      %v597 = vadd.f32 0.0, %v596
      %v598 = vpop.f32.mrb[0].mxu0
      %599 = vmatprep.mubr.bf16.mxu0 0
      %600 = vmatmul.mubr.bf16.gmra.mrb[0].mxu0 %v410
      %v601 = vpop.f32.mrb[0].mxu0
      %v602 = vadd.f32 0.0, %v601
      %v603 = vpop.f32.mrb[0].mxu0
      %v604 = vpop.f32.mrb[0].mxu0
      %v605 = vadd.f32 0.0, %v604
      %v606 = vpop.f32.mrb[0].mxu0
      %607 = vmatprep.mubr.bf16.mxu0 0
      %608 = vmatmul.mubr.bf16.gmra.mrb[0].mxu0 %v411
      %v609 = vpop.f32.mrb[0].mxu0
      %v610 = vadd.f32 0.0, %v609
      %v611 = vpop.f32.mrb[0].mxu0
      %v612 = vpop.f32.mrb[0].mxu0
      %v613 = vadd.f32 0.0, %v612
      %v614 = vpop.f32.mrb[0].mxu0
      %615 = vmatprep.mubr.bf16.mxu0 0
      %616 = vmatmul.mubr.bf16.gmra.mrb[0].mxu0 %v412
      %v617 = vpop.f32.mrb[0].mxu0
      %v618 = vadd.f32 0.0, %v617
      %v619 = vpop.f32.mrb[0].mxu0
      %v620 = vpop.f32.mrb[0].mxu0
      %v621 = vadd.f32 0.0, %v620
      %v622 = vpop.f32.mrb[0].mxu0
      %623 = vmatprep.mubr.bf16.mxu0 0
      %624 = vmatmul.mubr.bf16.gmra.mrb[0].mxu0 %v413
      %v625 = vpop.f32.mrb[0].mxu0
      %v626 = vadd.f32 0.0, %v625
      %v627 = vpop.f32.mrb[0].mxu0
      %v628 = vpop.f32.mrb[0].mxu0
      %v629 = vadd.f32 0.0, %v628
      %v630 = vpop.f32.mrb[0].mxu0
      %631 = vmatprep.mubr.bf16.mxu0 0
      %632 = vmatmul.mubr.bf16.gmra.mrb[0].mxu0 %v414
      %v633 = vpop.f32.mrb[0].mxu0
      %v634 = vadd.f32 0.0, %v633
      %v635 = vpop.f32.mrb[0].mxu0
      %v636 = vpop.f32.mrb[0].mxu0
      %v637 = vadd.f32 0.0, %v636
      %v638 = vpop.f32.mrb[0].mxu0
      %639 = vdwg.mxu0
      %v640 = vadd.f32 %v255, %v514
      %v641 = vadd.f32 %v256, %v517
      %v642 = vadd.f32 %v257, %v522
      %v643 = vadd.f32 %v258, %v525
      %v644 = vadd.f32 %v259, %v530
      %v645 = vadd.f32 %v260, %v533
      %v646 = vadd.f32 %v261, %v538
      %v647 = vadd.f32 %v262, %v541
      %v648 = vadd.f32 %v263, %v546
      %v649 = vadd.f32 %v264, %v549
      %v650 = vadd.f32 %v265, %v554
      %v651 = vadd.f32 %v266, %v557
      %v652 = vadd.f32 %v267, %v562
      %v653 = vadd.f32 %v268, %v565
      %v654 = vadd.f32 %v269, %v570
      %v655 = vadd.f32 %v270, %v573
      %v656 = vadd.f32 %v271, %v578
      %v657 = vadd.f32 %v272, %v581
      %v658 = vadd.f32 %v273, %v586
      %v659 = vadd.f32 %v274, %v589
      %v660 = vadd.f32 %v275, %v594
      %v661 = vadd.f32 %v276, %v597
      %v662 = vadd.f32 %v277, %v602
      %v663 = vadd.f32 %v278, %v605
      %v664 = vadd.f32 %v279, %v610
      %v665 = vadd.f32 %v280, %v613
      %v666 = vadd.f32 %v281, %v618
      %v667 = vadd.f32 %v282, %v621
      %v668 = vadd.f32 %v283, %v626
      %v669 = vadd.f32 %v284, %v629
      %v670 = vadd.f32 %v285, %v634
      %v671 = vadd.f32 %v286, %v637
      %672 = vst [vmem:[#allocation2] sm:$0xff] %v640
      %673 = vst [vmem:[#allocation2 + $0x8] sm:$0xff] %v641
      %674 = vst [vmem:[#allocation2 + $0x10] sm:$0xff] %v642
      %675 = vst [vmem:[#allocation2 + $0x18] sm:$0xff] %v643
      %676 = vst [vmem:[#allocation2 + $0x20] sm:$0xff] %v644
      %677 = vst [vmem:[#allocation2 + $0x28] sm:$0xff] %v645
      %678 = vst [vmem:[#allocation2 + $0x30] sm:$0xff] %v646
      %679 = vst [vmem:[#allocation2 + $0x38] sm:$0xff] %v647
      %680 = vst [vmem:[#allocation2 + $0x40] sm:$0xff] %v648
      %681 = vst [vmem:[#allocation2 + $0x48] sm:$0xff] %v649
      %682 = vst [vmem:[#allocation2 + $0x50] sm:$0xff] %v650
      %683 = vst [vmem:[#allocation2 + $0x58] sm:$0xff] %v651
      %684 = vst [vmem:[#allocation2 + $0x60] sm:$0xff] %v652
      %685 = vst [vmem:[#allocation2 + $0x68] sm:$0xff] %v653
      %686 = vst [vmem:[#allocation2 + $0x70] sm:$0xff] %v654
      %687 = vst [vmem:[#allocation2 + $0x78] sm:$0xff] %v655
      %688 = vst [vmem:[#allocation2 + $0x80] sm:$0xff] %v656
      %689 = vst [vmem:[#allocation2 + $0x88] sm:$0xff] %v657
      %690 = vst [vmem:[#allocation2 + $0x90] sm:$0xff] %v658
      %691 = vst [vmem:[#allocation2 + $0x98] sm:$0xff] %v659
      %692 = vst [vmem:[#allocation2 + $0xa0] sm:$0xff] %v660
      %693 = vst [vmem:[#allocation2 + $0xa8] sm:$0xff] %v661
      %694 = vst [vmem:[#allocation2 + $0xb0] sm:$0xff] %v662
      %695 = vst [vmem:[#allocation2 + $0xb8] sm:$0xff] %v663
      %696 = vst [vmem:[#allocation2 + $0xc0] sm:$0xff] %v664
      %697 = vst [vmem:[#allocation2 + $0xc8] sm:$0xff] %v665
      %698 = vst [vmem:[#allocation2 + $0xd0] sm:$0xff] %v666
      %699 = vst [vmem:[#allocation2 + $0xd8] sm:$0xff] %v667
      %700 = vst [vmem:[#allocation2 + $0xe0] sm:$0xff] %v668
      %701 = vst [vmem:[#allocation2 + $0xe8] sm:$0xff] %v669
      %702 = vst [vmem:[#allocation2 + $0xf0] sm:$0xff] %v670
      %703 = vst [vmem:[#allocation2 + $0xf8] sm:$0xff] %v671
      // Predicated region
      $region33: #{discriminator_forward.3} parent=27 // pred_check
        %p704 = pneg %p219
      $region34: #{discriminator_forward.3} parent=27 // pred_check_branch
        %706 = sbr.rel (%p704) target = $region36
      $region35: #{discriminator_forward.3} parent=27 // pred_region
        %v707 = vld [vmem:[#allocation2] sm:$0xff]
        %v708 = vld [vmem:[#allocation2 + $0x8] sm:$0xff]
        %v709 = vld [vmem:[#allocation2 + $0x10] sm:$0xff]
        %v710 = vld [vmem:[#allocation2 + $0x18] sm:$0xff]
        %v711 = vld [vmem:[#allocation2 + $0x20] sm:$0xff]
        %v712 = vld [vmem:[#allocation2 + $0x28] sm:$0xff]
        %v713 = vld [vmem:[#allocation2 + $0x30] sm:$0xff]
        %v714 = vld [vmem:[#allocation2 + $0x38] sm:$0xff]
        %v715 = vld [vmem:[#allocation2 + $0x40] sm:$0xff]
        %v716 = vld [vmem:[#allocation2 + $0x48] sm:$0xff]
        %v717 = vld [vmem:[#allocation2 + $0x50] sm:$0xff]
        %v718 = vld [vmem:[#allocation2 + $0x58] sm:$0xff]
        %v719 = vld [vmem:[#allocation2 + $0x60] sm:$0xff]
        %v720 = vld [vmem:[#allocation2 + $0x68] sm:$0xff]
        %v721 = vld [vmem:[#allocation2 + $0x70] sm:$0xff]
        %v722 = vld [vmem:[#allocation2 + $0x78] sm:$0xff]
        %v723 = vld [vmem:[#allocation2 + $0x80] sm:$0xff]
        %v724 = vld [vmem:[#allocation2 + $0x88] sm:$0xff]
        %v725 = vld [vmem:[#allocation2 + $0x90] sm:$0xff]
        %v726 = vld [vmem:[#allocation2 + $0x98] sm:$0xff]
        %v727 = vld [vmem:[#allocation2 + $0xa0] sm:$0xff]
        %v728 = vld [vmem:[#allocation2 + $0xa8] sm:$0xff]
        %v729 = vld [vmem:[#allocation2 + $0xb0] sm:$0xff]
        %v730 = vld [vmem:[#allocation2 + $0xb8] sm:$0xff]
        %v731 = vld [vmem:[#allocation2 + $0xc0] sm:$0xff]
        %v732 = vld [vmem:[#allocation2 + $0xc8] sm:$0xff]
        %v733 = vld [vmem:[#allocation2 + $0xd0] sm:$0xff]
        %v734 = vld [vmem:[#allocation2 + $0xd8] sm:$0xff]
        %v735 = vld [vmem:[#allocation2 + $0xe0] sm:$0xff]
        %v736 = vld [vmem:[#allocation2 + $0xe8] sm:$0xff]
        %v737 = vld [vmem:[#allocation2 + $0xf0] sm:$0xff]
        %v738 = vld [vmem:[#allocation2 + $0xf8] sm:$0xff]
        %vm739 = vcmp.gt.f32.partialorder %v707, 0.0
        %vm740 = vcmp.gt.f32.partialorder %v708, 0.0
        %vm741 = vcmp.gt.f32.partialorder %v709, 0.0
        %vm742 = vcmp.gt.f32.partialorder %v710, 0.0
        %vm743 = vcmp.gt.f32.partialorder %v711, 0.0
        %vm744 = vcmp.gt.f32.partialorder %v712, 0.0
        %vm745 = vcmp.gt.f32.partialorder %v713, 0.0
        %vm746 = vcmp.gt.f32.partialorder %v714, 0.0
        %vm747 = vcmp.gt.f32.partialorder %v715, 0.0
        %vm748 = vcmp.gt.f32.partialorder %v716, 0.0
        %vm749 = vcmp.gt.f32.partialorder %v717, 0.0
        %vm750 = vcmp.gt.f32.partialorder %v718, 0.0
        %vm751 = vcmp.gt.f32.partialorder %v719, 0.0
        %vm752 = vcmp.gt.f32.partialorder %v720, 0.0
        %vm753 = vcmp.gt.f32.partialorder %v721, 0.0
        %vm754 = vcmp.gt.f32.partialorder %v722, 0.0
        %vm755 = vcmp.gt.f32.partialorder %v723, 0.0
        %vm756 = vcmp.gt.f32.partialorder %v724, 0.0
        %vm757 = vcmp.gt.f32.partialorder %v725, 0.0
        %vm758 = vcmp.gt.f32.partialorder %v726, 0.0
        %vm759 = vcmp.gt.f32.partialorder %v727, 0.0
        %vm760 = vcmp.gt.f32.partialorder %v728, 0.0
        %vm761 = vcmp.gt.f32.partialorder %v729, 0.0
        %vm762 = vcmp.gt.f32.partialorder %v730, 0.0
        %vm763 = vcmp.gt.f32.partialorder %v731, 0.0
        %vm764 = vcmp.gt.f32.partialorder %v732, 0.0
        %vm765 = vcmp.gt.f32.partialorder %v733, 0.0
        %vm766 = vcmp.gt.f32.partialorder %v734, 0.0
        %vm767 = vcmp.gt.f32.partialorder %v735, 0.0
        %vm768 = vcmp.gt.f32.partialorder %v736, 0.0
        %vm769 = vcmp.gt.f32.partialorder %v737, 0.0
        %vm770 = vcmp.gt.f32.partialorder %v738, 0.0
        %v771 = vmul.f32 %v707, 0.2
        %v772 = vmul.f32 %v708, 0.2
        %v773 = vmul.f32 %v709, 0.2
        %v774 = vmul.f32 %v710, 0.2
        %v775 = vmul.f32 %v711, 0.2
        %v776 = vmul.f32 %v712, 0.2
        %v777 = vmul.f32 %v713, 0.2
        %v778 = vmul.f32 %v714, 0.2
        %v779 = vmul.f32 %v715, 0.2
        %v780 = vmul.f32 %v716, 0.2
        %v781 = vmul.f32 %v717, 0.2
        %v782 = vmul.f32 %v718, 0.2
        %v783 = vmul.f32 %v719, 0.2
        %v784 = vmul.f32 %v720, 0.2
        %v785 = vmul.f32 %v721, 0.2
        %v786 = vmul.f32 %v722, 0.2
        %v787 = vmul.f32 %v723, 0.2
        %v788 = vmul.f32 %v724, 0.2
        %v789 = vmul.f32 %v725, 0.2
        %v790 = vmul.f32 %v726, 0.2
        %v791 = vmul.f32 %v727, 0.2
        %v792 = vmul.f32 %v728, 0.2
        %v793 = vmul.f32 %v729, 0.2
        %v794 = vmul.f32 %v730, 0.2
        %v795 = vmul.f32 %v731, 0.2
        %v796 = vmul.f32 %v732, 0.2
        %v797 = vmul.f32 %v733, 0.2
        %v798 = vmul.f32 %v734, 0.2
        %v799 = vmul.f32 %v735, 0.2
        %v800 = vmul.f32 %v736, 0.2
        %v801 = vmul.f32 %v737, 0.2
        %v802 = vmul.f32 %v738, 0.2
        %v803 = vsel %vm739, %v707, %v771
        %v804 = vsel %vm740, %v708, %v772
        %v805 = vsel %vm741, %v709, %v773
        %v806 = vsel %vm742, %v710, %v774
        %v807 = vsel %vm743, %v711, %v775
        %v808 = vsel %vm744, %v712, %v776
        %v809 = vsel %vm745, %v713, %v777
        %v810 = vsel %vm746, %v714, %v778
        %v811 = vsel %vm747, %v715, %v779
        %v812 = vsel %vm748, %v716, %v780
        %v813 = vsel %vm749, %v717, %v781
        %v814 = vsel %vm750, %v718, %v782
        %v815 = vsel %vm751, %v719, %v783
        %v816 = vsel %vm752, %v720, %v784
        %v817 = vsel %vm753, %v721, %v785
        %v818 = vsel %vm754, %v722, %v786
        %v819 = vsel %vm755, %v723, %v787
        %v820 = vsel %vm756, %v724, %v788
        %v821 = vsel %vm757, %v725, %v789
        %v822 = vsel %vm758, %v726, %v790
        %v823 = vsel %vm759, %v727, %v791
        %v824 = vsel %vm760, %v728, %v792
        %v825 = vsel %vm761, %v729, %v793
        %v826 = vsel %vm762, %v730, %v794
        %v827 = vsel %vm763, %v731, %v795
        %v828 = vsel %vm764, %v732, %v796
        %v829 = vsel %vm765, %v733, %v797
        %v830 = vsel %vm766, %v734, %v798
        %v831 = vsel %vm767, %v735, %v799
        %v832 = vsel %vm768, %v736, %v800
        %v833 = vsel %vm769, %v737, %v801
        %v834 = vsel %vm770, %v738, %v802
        %v835 = vpack.c.bf16 %v804, %v803
        %v836 = vpack.c.bf16 %v806, %v805
        %v837 = vpack.c.bf16 %v808, %v807
        %v838 = vpack.c.bf16 %v810, %v809
        %v839 = vpack.c.bf16 %v812, %v811
        %v840 = vpack.c.bf16 %v814, %v813
        %v841 = vpack.c.bf16 %v816, %v815
        %v842 = vpack.c.bf16 %v818, %v817
        %v843 = vpack.c.bf16 %v820, %v819
        %v844 = vpack.c.bf16 %v822, %v821
        %v845 = vpack.c.bf16 %v824, %v823
        %v846 = vpack.c.bf16 %v826, %v825
        %v847 = vpack.c.bf16 %v828, %v827
        %v848 = vpack.c.bf16 %v830, %v829
        %v849 = vpack.c.bf16 %v832, %v831
        %v850 = vpack.c.bf16 %v834, %v833
        %v867 = vunpack.c.l.b16 %v835
        %v868 = vunpack.c.h.b16 %v835
        %v869 = vunpack.c.l.b16 %v836
        %v870 = vunpack.c.h.b16 %v836
        %v871 = vunpack.c.l.b16 %v837
        %v872 = vunpack.c.h.b16 %v837
        %v873 = vunpack.c.l.b16 %v838
        %v874 = vunpack.c.h.b16 %v838
        %v875 = vunpack.c.l.b16 %v839
        %v876 = vunpack.c.h.b16 %v839
        %v877 = vunpack.c.l.b16 %v840
        %v878 = vunpack.c.h.b16 %v840
        %v879 = vunpack.c.l.b16 %v841
        %v880 = vunpack.c.h.b16 %v841
        %v881 = vunpack.c.l.b16 %v842
        %v882 = vunpack.c.h.b16 %v842
        %v883 = vunpack.c.l.b16 %v843
        %v884 = vunpack.c.h.b16 %v843
        %v885 = vunpack.c.l.b16 %v844
        %v886 = vunpack.c.h.b16 %v844
        %v887 = vunpack.c.l.b16 %v845
        %v888 = vunpack.c.h.b16 %v845
        %v889 = vunpack.c.l.b16 %v846
        %v890 = vunpack.c.h.b16 %v846
        %v891 = vunpack.c.l.b16 %v847
        %v892 = vunpack.c.h.b16 %v847
        %v893 = vunpack.c.l.b16 %v848
        %v894 = vunpack.c.h.b16 %v848
        %v895 = vunpack.c.l.b16 %v849
        %v896 = vunpack.c.h.b16 %v849
        %v897 = vunpack.c.l.b16 %v850
        %v898 = vunpack.c.h.b16 %v850
        %v899 = vpack.c.b16 %v867, %v867
        %v900 = vpack.c.b16 %v868, %v868
        %v901 = vpack.c.b16 %v869, %v869
        %v902 = vpack.c.b16 %v870, %v870
        %v903 = vpack.c.b16 %v871, %v871
        %v904 = vpack.c.b16 %v872, %v872
        %v905 = vpack.c.b16 %v873, %v873
        %v906 = vpack.c.b16 %v874, %v874
        %v907 = vpack.c.b16 %v875, %v875
        %v908 = vpack.c.b16 %v876, %v876
        %v909 = vpack.c.b16 %v877, %v877
        %v910 = vpack.c.b16 %v878, %v878
        %v911 = vpack.c.b16 %v879, %v879
        %v912 = vpack.c.b16 %v880, %v880
        %v913 = vpack.c.b16 %v881, %v881
        %v914 = vpack.c.b16 %v882, %v882
        %v915 = vpack.c.b16 %v883, %v883
        %v916 = vpack.c.b16 %v884, %v884
        %v917 = vpack.c.b16 %v885, %v885
        %v918 = vpack.c.b16 %v886, %v886
        %v919 = vpack.c.b16 %v887, %v887
        %v920 = vpack.c.b16 %v888, %v888
        %v921 = vpack.c.b16 %v889, %v889
        %v922 = vpack.c.b16 %v890, %v890
        %v923 = vpack.c.b16 %v891, %v891
        %v924 = vpack.c.b16 %v892, %v892
        %v925 = vpack.c.b16 %v893, %v893
        %v926 = vpack.c.b16 %v894, %v894
        %v927 = vpack.c.b16 %v895, %v895
        %v928 = vpack.c.b16 %v896, %v896
        %v929 = vpack.c.b16 %v897, %v897
        %v930 = vpack.c.b16 %v898, %v898
        %963 = vst [vmem:[%s216] sm:$0xf] %v899
        %964 = vst [vmem:[%s216 + $0x4] sm:$0xf] %v900
        %965 = vst [vmem:[%s216 + $0x8] sm:$0xf] %v901
        %966 = vst [vmem:[%s216 + $0xc] sm:$0xf] %v902
        %967 = vst [vmem:[%s216 + $0x10] sm:$0xf] %v903
        %968 = vst [vmem:[%s216 + $0x14] sm:$0xf] %v904
        %969 = vst [vmem:[%s216 + $0x18] sm:$0xf] %v905
        %970 = vst [vmem:[%s216 + $0x1c] sm:$0xf] %v906
        %971 = vst [vmem:[%s216 + $0x20] sm:$0xf] %v907
        %972 = vst [vmem:[%s216 + $0x24] sm:$0xf] %v908
        %973 = vst [vmem:[%s216 + $0x28] sm:$0xf] %v909
        %974 = vst [vmem:[%s216 + $0x2c] sm:$0xf] %v910
        %975 = vst [vmem:[%s216 + $0x30] sm:$0xf] %v911
        %976 = vst [vmem:[%s216 + $0x34] sm:$0xf] %v912
        %977 = vst [vmem:[%s216 + $0x38] sm:$0xf] %v913
        %978 = vst [vmem:[%s216 + $0x3c] sm:$0xf] %v914
        %979 = vst [vmem:[%s216 + $0x40] sm:$0xf] %v915
        %980 = vst [vmem:[%s216 + $0x44] sm:$0xf] %v916
        %981 = vst [vmem:[%s216 + $0x48] sm:$0xf] %v917
        %982 = vst [vmem:[%s216 + $0x4c] sm:$0xf] %v918
        %983 = vst [vmem:[%s216 + $0x50] sm:$0xf] %v919
        %984 = vst [vmem:[%s216 + $0x54] sm:$0xf] %v920
        %985 = vst [vmem:[%s216 + $0x58] sm:$0xf] %v921
        %986 = vst [vmem:[%s216 + $0x5c] sm:$0xf] %v922
        %987 = vst [vmem:[%s216 + $0x60] sm:$0xf] %v923
        %988 = vst [vmem:[%s216 + $0x64] sm:$0xf] %v924
        %989 = vst [vmem:[%s216 + $0x68] sm:$0xf] %v925
        %990 = vst [vmem:[%s216 + $0x6c] sm:$0xf] %v926
        %991 = vst [vmem:[%s216 + $0x70] sm:$0xf] %v927
        %992 = vst [vmem:[%s216 + $0x74] sm:$0xf] %v928
        %993 = vst [vmem:[%s216 + $0x78] sm:$0xf] %v929
        %994 = vst [vmem:[%s216 + $0x7c] sm:$0xf] %v930
      $region36: #{discriminator_forward.3} parent=27 // pred_fallthru
        _
      %s995 = smul.u32 32, %s18
      %p996 = scmp.lt.s32.totalorder %s995, 63
      %s997 = scalar_select %p996, %s995, 63
      %p998 = scmp.lt.s32.totalorder %s19, 0
      %s999 = scalar_select %p998, %s19, 0
      %s1000 = sadd.s32 %s999, %s997
      %s1001 = smul.addr %s1000, 4
      %s1002 = scalar_lea.vmem %s2, %s1001
      // Predicated region
      $region37: #{discriminator_forward.3} parent=27 // pred_check
        %p1003 = pneg %p108
      $region38: #{discriminator_forward.3} parent=27 // pred_check_branch
        %1005 = sbr.rel (%p1003) target = $region40
      $region39: #{discriminator_forward.3} parent=27 // pred_region
        %s1006 = smul.u32 32, %s18
      $region40: #{discriminator_forward.3} parent=27 // pred_fallthru
        _
    $region28: #{discriminator_forward.3} parent=5 // pred_fallthru
      _
    %p1007 = scmp.le.s32.totalorder 2, %s8
    // Predicated region
    $region41: #{discriminator_forward.3} parent=5 // pred_check
      %p1008 = pneg %p1007
    $region42: #{discriminator_forward.3} parent=5 // pred_check_branch
      %1010 = sbr.rel (%p1008) target = $region44
    $region43: #{discriminator_forward.3} parent=5 // pred_region
      %s1011 = ssub.s32 %s8, 2
      // Predicated region
      $region45: #{discriminator_forward.3} parent=43 // pred_check
        %p1012 = pneg %p114
      $region46: #{discriminator_forward.3} parent=43 // pred_check_branch
        %1014 = sbr.rel (%p1012) target = $region48
      $region47: #{discriminator_forward.3} parent=43 // pred_region
        %s1015 = smul.u32 32, %s21
        %p1016 = scmp.lt.s32.totalorder %s1015, 63
        %s1017 = scalar_select %p1016, %s1015, 63
        %p1018 = scmp.lt.s32.totalorder %s22, 0
        %s1019 = scalar_select %p1018, %s22, 0
        %s1020 = sadd.s32 %s1019, %s1017
        %s1021 = smul.addr %s1020, 4
        %s1022 = scalar_lea.vmem %s2, %s1021
      $region48: #{discriminator_forward.3} parent=43 // pred_fallthru
        _
    $region44: #{discriminator_forward.3} parent=5 // pred_fallthru
      _
  $region6: #{discriminator_forward.3} parent=0 // loop_footer
    %s12 = sadd.s32 1, %s8
  $region7: #{discriminator_forward.3} parent=0 // loop_footer_branch
    %7 = sbr.rel target = $region3
  $region8: #{discriminator_forward.3} parent=0 // loop_exit
    _

// kernel: discriminator_forward.4
$region0: #{discriminator_forward.4}
  #allocation0 [shape = 'u32[]', space=smem, size = 0x4, offset = 0x4, fixed_abs, tag = 'smem constant byte address 0x4 - core index']
  #allocation1 [shape = 'u32[144,128]{1,0:T(1,128)}', space=vmem, size = 0x12000, scoped, tag = 'internal scratch']
  #allocation2 [shape = 'f32[64,128]{1,0:T(8,128)}', space=vmem, size = 0x8000, scoped, tag = 'scratch operand']
  %s0 = inlined_call_operand.vmem [shape: bf16[128,256], index: 0, kind: input, shape index: {}]
  %s1 = inlined_call_operand.vmem [shape: bf16[256,128], index: 1, kind: input, shape index: {}]
  %s2 = inlined_call_operand.vmem [shape: bf16[128,128], index: 2, kind: output, shape index: {0}]
  %s3 = inlined_call_operand.vmem [shape: f32[16,128], index: 3, kind: output, shape index: {1}]
  %4 = xla_tuple %s2, %s3
  %s5 = sld [smem:[#allocation0]]
  $region57: #{discriminator_forward.4} parent=0
    _
  %s7 = ssub.s32 1, %s5
  %s8 = scalar_select 0, %s7, %s5
  loop: start=0, step=1, limit=4
  $region2: #{discriminator_forward.4} parent=0 // loop_pre_header
    _
  $region3: #{discriminator_forward.4} parent=0 // loop_header
    %s10 = sphi 0, %s14
    %p11 = scmp.ge.s32.totalorder %s10, 4
    %s17 = sphi 0, %s36
    %s18 = sphi 0, %s32
    %s19 = sphi 0, %s28
    %s20 = sphi 0, %s17
    %s21 = sphi 0, %s18
    %s22 = sphi 0, %s19
    %s23 = sphi 0, %s20
    %s24 = sphi 0, %s21
    %s25 = sphi 0, %s22
    %s41 = sphi 0, %s43
    %s44 = sphi 0, %s41
    %s45 = sphi 0, %s44
    %s61 = sphi 0, %s45
    %s69 = sphi 0, %s71
    %s72 = sphi 0, %s69
    %s73 = sphi 0, %s72
    %s89 = sphi 0, %s73
    %s97 = sphi 0, %s99
    %s100 = sphi 0, %s97
    %s101 = sphi 0, %s100
    %s117 = sphi 0, %s101
    %s125 = sphi 0, %s127
    %s128 = sphi 0, %s125
    %s129 = sphi 0, %s128
    %s145 = sphi 0, %s129
  $region4: #{discriminator_forward.4} parent=0 // loop_header_branch
    %13 = sbr.rel (%p11) target = $region8
  $region5: #{discriminator_forward.4} parent=0 // loop_body
    %s15 = ssub.s32 %s10, 1
    %s16 = ssub.s32 %s10, 2
    %s26 = sadd.s32 1, %s19
    %p27 = scmp.ge.s32.totalorder %s26, 1
    %s28 = scalar_select %p27, 0, %s26
    %s29 = sadd.s32 1, %s18
    %s30 = scalar_select %p27, %s29, %s18
    %p31 = scmp.ge.s32.totalorder %s30, 1
    %s32 = scalar_select %p31, 0, %s30
    %s33 = sadd.s32 1, %s17
    %s34 = scalar_select %p31, %s33, %s17
    %p35 = scmp.ge.s32.totalorder %s34, 2
    %s36 = scalar_select %p35, 0, %s34
    %s37 = ssub.s32 %s17, %s36
    %s38 = ssub.s32 %s19, %s28
    %s39 = sor.u32 %s37, %s38
    %p40 = scmp.eq.s32.totalorder %s39, 0
    %s42 = sadd.s32 %s41, 1
    %s43 = scalar_select %p40, %s41, %s42
    %p46 = pneg %p40
    %p47 = scmp.eq.s32.totalorder %s10, 1
    %p48 = por %p46, %p47
    %p49 = scmp.ne.s32.totalorder %s41, %s44
    %p50 = scmp.eq.s32.totalorder %s10, 0
    %p51 = por %p49, %p50
    %p52 = scmp.ne.s32.totalorder %s41, %s44
    %p53 = scmp.eq.s32.totalorder %s15, 1
    %p54 = por %p52, %p53
    %p55 = scmp.ne.s32.totalorder %s44, %s45
    %p56 = scmp.eq.s32.totalorder %s15, 0
    %p57 = por %p55, %p56
    %p58 = scmp.ne.s32.totalorder %s44, %s45
    %p59 = scmp.eq.s32.totalorder %s16, 1
    %p60 = por %p58, %p59
    %p62 = scmp.ne.s32.totalorder %s45, %s61
    %p63 = scmp.eq.s32.totalorder %s16, 0
    %p64 = por %p62, %p63
    %s65 = ssub.s32 %s19, %s28
    %s66 = ssub.s32 %s18, %s32
    %s67 = sor.u32 %s65, %s66
    %p68 = scmp.eq.s32.totalorder %s67, 0
    %s70 = sadd.s32 %s69, 1
    %s71 = scalar_select %p68, %s69, %s70
    %p74 = pneg %p68
    %p75 = scmp.eq.s32.totalorder %s10, 1
    %p76 = por %p74, %p75
    %p77 = scmp.ne.s32.totalorder %s69, %s72
    %p78 = scmp.eq.s32.totalorder %s10, 0
    %p79 = por %p77, %p78
    %p80 = scmp.ne.s32.totalorder %s69, %s72
    %p81 = scmp.eq.s32.totalorder %s15, 1
    %p82 = por %p80, %p81
    %p83 = scmp.ne.s32.totalorder %s72, %s73
    %p84 = scmp.eq.s32.totalorder %s15, 0
    %p85 = por %p83, %p84
    %p86 = scmp.ne.s32.totalorder %s72, %s73
    %p87 = scmp.eq.s32.totalorder %s16, 1
    %p88 = por %p86, %p87
    %p90 = scmp.ne.s32.totalorder %s73, %s89
    %p91 = scmp.eq.s32.totalorder %s16, 0
    %p92 = por %p90, %p91
    %s93 = ssub.s32 %s17, %s36
    %s94 = ssub.s32 %s18, %s32
    %s95 = sor.u32 %s93, %s94
    %p96 = scmp.eq.s32.totalorder %s95, 0
    %s98 = sadd.s32 %s97, 1
    %s99 = scalar_select %p96, %s97, %s98
    %p102 = pneg %p96
    %p103 = scmp.eq.s32.totalorder %s10, 1
    %p104 = por %p102, %p103
    %p105 = scmp.ne.s32.totalorder %s97, %s100
    %p106 = scmp.eq.s32.totalorder %s10, 0
    %p107 = por %p105, %p106
    %p108 = scmp.ne.s32.totalorder %s97, %s100
    %p109 = scmp.eq.s32.totalorder %s15, 1
    %p110 = por %p108, %p109
    %p111 = scmp.ne.s32.totalorder %s100, %s101
    %p112 = scmp.eq.s32.totalorder %s15, 0
    %p113 = por %p111, %p112
    %p114 = scmp.ne.s32.totalorder %s100, %s101
    %p115 = scmp.eq.s32.totalorder %s16, 1
    %p116 = por %p114, %p115
    %p118 = scmp.ne.s32.totalorder %s101, %s117
    %p119 = scmp.eq.s32.totalorder %s16, 0
    %p120 = por %p118, %p119
    %s121 = ssub.s32 %s17, %s36
    %s122 = ssub.s32 %s18, %s32
    %s123 = sor.u32 %s121, %s122
    %p124 = scmp.eq.s32.totalorder %s123, 0
    %s126 = sadd.s32 %s125, 1
    %s127 = scalar_select %p124, %s125, %s126
    %p130 = pneg %p124
    %p131 = scmp.eq.s32.totalorder %s10, 1
    %p132 = por %p130, %p131
    %p133 = scmp.ne.s32.totalorder %s125, %s128
    %p134 = scmp.eq.s32.totalorder %s10, 0
    %p135 = por %p133, %p134
    %p136 = scmp.ne.s32.totalorder %s125, %s128
    %p137 = scmp.eq.s32.totalorder %s15, 1
    %p138 = por %p136, %p137
    %p139 = scmp.ne.s32.totalorder %s128, %s129
    %p140 = scmp.eq.s32.totalorder %s15, 0
    %p141 = por %p139, %p140
    %p142 = scmp.ne.s32.totalorder %s128, %s129
    %p143 = scmp.eq.s32.totalorder %s16, 1
    %p144 = por %p142, %p143
    %p146 = scmp.ne.s32.totalorder %s129, %s145
    %p147 = scmp.eq.s32.totalorder %s16, 0
    %p148 = por %p146, %p147
    %p149 = scmp.le.s32.totalorder 1, %s10
    %p150 = scmp.lt.s32.totalorder %s10, 3
    %p151 = pnand %p149, %p150
    %p152 = pneg %p151
    // Predicated region
    $region9: #{discriminator_forward.4} parent=5 // pred_check
      _
    $region10: #{discriminator_forward.4} parent=5 // pred_check_branch
      %154 = sbr.rel (%p151) target = $region12
    $region11: #{discriminator_forward.4} parent=5 // pred_region
      %s155 = ssub.s32 %s10, 1
      // Predicated region
      $region13: #{discriminator_forward.4} parent=11 // pred_check
        %p156 = pneg %p85
      $region14: #{discriminator_forward.4} parent=11 // pred_check_branch
        %158 = sbr.rel (%p156) target = $region16
      $region15: #{discriminator_forward.4} parent=11 // pred_region
        %s159 = smul.u32 32, %s22
        %p160 = scmp.lt.s32.totalorder %s159, 31
        %s161 = scalar_select %p160, %s159, 31
        %p162 = scmp.lt.s32.totalorder %s21, 0
        %s163 = scalar_select %p162, %s21, 0
        %s164 = sadd.s32 %s163, %s161
        %s165 = smul.addr %s164, 4
        %s166 = scalar_lea.vmem %s1, %s165
        %s167 = smul.u32 32, %s22
      $region16: #{discriminator_forward.4} parent=11 // pred_fallthru
        _
    $region12: #{discriminator_forward.4} parent=5 // pred_fallthru
      _
    %p168 = scmp.lt.s32.totalorder %s10, 2
    // Predicated region
    $region17: #{discriminator_forward.4} parent=5 // pred_check
      %p169 = pneg %p168
    $region18: #{discriminator_forward.4} parent=5 // pred_check_branch
      %171 = sbr.rel (%p169) target = $region20
    $region19: #{discriminator_forward.4} parent=5 // pred_region
      // Predicated region
      $region21: #{discriminator_forward.4} parent=19 // pred_check
        %p172 = pneg %p51
      $region22: #{discriminator_forward.4} parent=19 // pred_check_branch
        %174 = sbr.rel (%p172) target = $region24
      $region23: #{discriminator_forward.4} parent=19 // pred_region
        %s175 = smul.u32 8, %s17
        %s176 = smul.u32 2, %s19
        %p177 = scmp.lt.s32.totalorder %s175, 15
        %s178 = scalar_select %p177, %s175, 15
        %p179 = scmp.lt.s32.totalorder %s176, 1
        %s180 = scalar_select %p179, %s176, 1
        %s181 = smul.addr %s178, 2
        %s182 = sadd.s32 %s180, %s181
        %s183 = smul.addr %s182, 4
        %s184 = scalar_lea.vmem %s0, %s183
        %s185 = smul.u32 8, %s17
        %s186 = smul.u32 2, %s19
      $region24: #{discriminator_forward.4} parent=19 // pred_fallthru
        _
    $region20: #{discriminator_forward.4} parent=5 // pred_fallthru
      _
    %p187 = scmp.le.s32.totalorder 1, %s10
    %p188 = scmp.lt.s32.totalorder %s10, 3
    %p189 = pnand %p187, %p188
    %p190 = pneg %p189
    // Predicated region
    $region25: #{discriminator_forward.4} parent=5 // pred_check
      _
    $region26: #{discriminator_forward.4} parent=5 // pred_check_branch
      %192 = sbr.rel (%p189) target = $region28
    $region27: #{discriminator_forward.4} parent=5 // pred_region
      %s193 = ssub.s32 %s10, 1
      %s194 = smul.u32 8, %s20
      %s195 = smul.u32 2, %s22
      %p196 = scmp.lt.s32.totalorder %s194, 15
      %s197 = scalar_select %p196, %s194, 15
      %p198 = scmp.lt.s32.totalorder %s195, 1
      %s199 = scalar_select %p198, %s195, 1
      %s200 = smul.addr %s197, 2
      %s201 = sadd.s32 %s199, %s200
      %s202 = smul.addr %s201, 4
      %s203 = scalar_lea.vmem %s0, %s202
      %p204 = pneg %p57
      %p205 = pneg %p54
      %s206 = smul.u32 32, %s22
      %p207 = scmp.lt.s32.totalorder %s206, 31
      %s208 = scalar_select %p207, %s206, 31
      %p209 = scmp.lt.s32.totalorder %s21, 0
      %s210 = scalar_select %p209, %s21, 0
      %s211 = sadd.s32 %s210, %s208
      %s212 = smul.addr %s211, 4
      %s213 = scalar_lea.vmem %s1, %s212
      %p214 = pneg %p85
      %p215 = pneg %p82
      %p216 = pneg %p113
      %p217 = pneg %p110
      %s218 = smul.u32 8, %s20
      %p219 = scmp.lt.s32.totalorder %s218, 15
      %s220 = scalar_select %p219, %s218, 15
      %p221 = scmp.lt.s32.totalorder %s21, 0
      %s222 = scalar_select %p221, %s21, 0
      %s223 = sadd.s32 %s222, %s220
      %s224 = smul.addr %s223, 4
      %s225 = scalar_lea.vmem %s2, %s224
      %p226 = pneg %p141
      %p227 = pneg %p138
      %p228 = scmp.lt.s32.totalorder %s20, 1
      %s229 = scalar_select %p228, %s20, 1
      %p230 = scmp.lt.s32.totalorder %s21, 0
      %s231 = scalar_select %p230, %s21, 0
      %s232 = sadd.s32 %s231, %s229
      %s233 = smul.addr %s232, 8
      %s234 = scalar_lea.vmem %s3, %s233
      %s235 = smul.u32 8, %s20
      %s236 = smul.u32 2, %s22
      %p237 = scmp.lt.s32.totalorder %s235, 15
      %s238 = scalar_select %p237, %s235, 15
      %p239 = scmp.lt.s32.totalorder %s236, 1
      %s240 = scalar_select %p239, %s236, 1
      %s241 = smul.addr %s238, 2
      %s242 = sadd.s32 %s240, %s241
      %s243 = smul.addr %s242, 4
      %s244 = scalar_lea.vmem %s0, %s243
      %s245 = smul.u32 8, %s20
      %s246 = smul.u32 2, %s22
      %s247 = smul.u32 32, %s22
      %p248 = scmp.lt.s32.totalorder %s247, 31
      %s249 = scalar_select %p248, %s247, 31
      %p250 = scmp.lt.s32.totalorder %s21, 0
      %s251 = scalar_select %p250, %s21, 0
      %s252 = sadd.s32 %s251, %s249
      %s253 = smul.addr %s252, 4
      %s254 = scalar_lea.vmem %s1, %s253
      %s255 = smul.u32 32, %s22
      %s256 = smul.u32 8, %s20
      %p257 = scmp.lt.s32.totalorder %s256, 15
      %s258 = scalar_select %p257, %s256, 15
      %p259 = scmp.lt.s32.totalorder %s21, 0
      %s260 = scalar_select %p259, %s21, 0
      %s261 = sadd.s32 %s260, %s258
      %s262 = smul.addr %s261, 4
      %s263 = scalar_lea.vmem %s2, %s262
      %s264 = smul.u32 8, %s20
      %p265 = scmp.lt.s32.totalorder %s20, 1
      %s266 = scalar_select %p265, %s20, 1
      %p267 = scmp.lt.s32.totalorder %s21, 0
      %s268 = scalar_select %p267, %s21, 0
      %s269 = sadd.s32 %s268, %s266
      %s270 = smul.addr %s269, 8
      %s271 = scalar_lea.vmem %s3, %s270
      %p273 = scmp.eq.s32.totalorder %s22, 0
      // Predicated region
      $region29: #{discriminator_forward.4} parent=27 // pred_check
        %p274 = pneg %p273
      $region30: #{discriminator_forward.4} parent=27 // pred_check_branch
        %276 = sbr.rel (%p274) target = $region32
      $region31: #{discriminator_forward.4} parent=27 // pred_region
        %277 = vst [vmem:[#allocation2] sm:$0xff] 0.0
        %278 = vst [vmem:[#allocation2 + $0x8] sm:$0xff] 0.0
        %279 = vst [vmem:[#allocation2 + $0x10] sm:$0xff] 0.0
        %280 = vst [vmem:[#allocation2 + $0x18] sm:$0xff] 0.0
        %281 = vst [vmem:[#allocation2 + $0x20] sm:$0xff] 0.0
        %282 = vst [vmem:[#allocation2 + $0x28] sm:$0xff] 0.0
        %283 = vst [vmem:[#allocation2 + $0x30] sm:$0xff] 0.0
        %284 = vst [vmem:[#allocation2 + $0x38] sm:$0xff] 0.0
      $region32: #{discriminator_forward.4} parent=27 // pred_fallthru
        _
      %v285 = vld [vmem:[#allocation2] sm:$0xff]
      %v286 = vld [vmem:[#allocation2 + $0x8] sm:$0xff]
      %v287 = vld [vmem:[#allocation2 + $0x10] sm:$0xff]
      %v288 = vld [vmem:[#allocation2 + $0x18] sm:$0xff]
      %v289 = vld [vmem:[#allocation2 + $0x20] sm:$0xff]
      %v290 = vld [vmem:[#allocation2 + $0x28] sm:$0xff]
      %v291 = vld [vmem:[#allocation2 + $0x30] sm:$0xff]
      %v292 = vld [vmem:[#allocation2 + $0x38] sm:$0xff]
      %v293 = vld [vmem:[%s244] sm:$0xff]
      %v294 = vld [vmem:[%s244 + $0x8] sm:$0xff]
      %v295 = vld [vmem:[%s244 + $0x10] sm:$0xff]
      %v296 = vld [vmem:[%s244 + $0x18] sm:$0xff]
      %v297 = vld [vmem:[%s244 + $0x20] sm:$0xff]
      %v298 = vld [vmem:[%s244 + $0x28] sm:$0xff]
      %v299 = vld [vmem:[%s244 + $0x30] sm:$0xff]
      %v300 = vld [vmem:[%s244 + $0x38] sm:$0xff]
      %v301 = vld [vmem:[%s254] sm:$0xf]
      %v302 = vld [vmem:[%s254 + $0x4] sm:$0xf]
      %v303 = vld [vmem:[%s254 + $0x8] sm:$0xf]
      %v304 = vld [vmem:[%s254 + $0xc] sm:$0xf]
      %v305 = vld [vmem:[%s254 + $0x10] sm:$0xf]
      %v306 = vld [vmem:[%s254 + $0x14] sm:$0xf]
      %v307 = vld [vmem:[%s254 + $0x18] sm:$0xf]
      %v308 = vld [vmem:[%s254 + $0x1c] sm:$0xf]
      %v309 = vld [vmem:[%s254 + $0x20] sm:$0xf]
      %v310 = vld [vmem:[%s254 + $0x24] sm:$0xf]
      %v311 = vld [vmem:[%s254 + $0x28] sm:$0xf]
      %v312 = vld [vmem:[%s254 + $0x2c] sm:$0xf]
      %v313 = vld [vmem:[%s254 + $0x30] sm:$0xf]
      %v314 = vld [vmem:[%s254 + $0x34] sm:$0xf]
      %v315 = vld [vmem:[%s254 + $0x38] sm:$0xf]
      %v316 = vld [vmem:[%s254 + $0x3c] sm:$0xf]
      %v317 = vld [vmem:[%s254 + $0x40] sm:$0xf]
      %v318 = vld [vmem:[%s254 + $0x44] sm:$0xf]
      %v319 = vld [vmem:[%s254 + $0x48] sm:$0xf]
      %v320 = vld [vmem:[%s254 + $0x4c] sm:$0xf]
      %v321 = vld [vmem:[%s254 + $0x50] sm:$0xf]
      %v322 = vld [vmem:[%s254 + $0x54] sm:$0xf]
      %v323 = vld [vmem:[%s254 + $0x58] sm:$0xf]
      %v324 = vld [vmem:[%s254 + $0x5c] sm:$0xf]
      %v325 = vld [vmem:[%s254 + $0x60] sm:$0xf]
      %v326 = vld [vmem:[%s254 + $0x64] sm:$0xf]
      %v327 = vld [vmem:[%s254 + $0x68] sm:$0xf]
      %v328 = vld [vmem:[%s254 + $0x6c] sm:$0xf]
      %v329 = vld [vmem:[%s254 + $0x70] sm:$0xf]
      %v330 = vld [vmem:[%s254 + $0x74] sm:$0xf]
      %v331 = vld [vmem:[%s254 + $0x78] sm:$0xf]
      %v332 = vld [vmem:[%s254 + $0x7c] sm:$0xf]
      %v341 = vunpack.c.l.b16 %v293
      %v342 = vunpack.c.h.b16 %v293
      %v343 = vunpack.c.l.b16 %v294
      %v344 = vunpack.c.h.b16 %v294
      %v345 = vunpack.c.l.b16 %v295
      %v346 = vunpack.c.h.b16 %v295
      %v347 = vunpack.c.l.b16 %v296
      %v348 = vunpack.c.h.b16 %v296
      %v349 = vunpack.c.l.b16 %v297
      %v350 = vunpack.c.h.b16 %v297
      %v351 = vunpack.c.l.b16 %v298
      %v352 = vunpack.c.h.b16 %v298
      %v353 = vunpack.c.l.b16 %v299
      %v354 = vunpack.c.h.b16 %v299
      %v355 = vunpack.c.l.b16 %v300
      %v356 = vunpack.c.h.b16 %v300
      %v357 = vpack.c.b16 %v343, %v341
      %v358 = vpack.c.b16 %v344, %v342
      %v359 = vpack.c.b16 %v347, %v345
      %v360 = vpack.c.b16 %v348, %v346
      %v361 = vpack.c.b16 %v351, %v349
      %v362 = vpack.c.b16 %v352, %v350
      %v363 = vpack.c.b16 %v355, %v353
      %v364 = vpack.c.b16 %v356, %v354
      %v405 = vunpack.c.l.b16 %v301
      %v406 = vunpack.c.l.b16 %v302
      %v407 = vunpack.c.l.b16 %v303
      %v408 = vunpack.c.l.b16 %v304
      %v409 = vunpack.c.l.b16 %v305
      %v410 = vunpack.c.l.b16 %v306
      %v411 = vunpack.c.l.b16 %v307
      %v412 = vunpack.c.l.b16 %v308
      %v413 = vunpack.c.l.b16 %v309
      %v414 = vunpack.c.l.b16 %v310
      %v415 = vunpack.c.l.b16 %v311
      %v416 = vunpack.c.l.b16 %v312
      %v417 = vunpack.c.l.b16 %v313
      %v418 = vunpack.c.l.b16 %v314
      %v419 = vunpack.c.l.b16 %v315
      %v420 = vunpack.c.l.b16 %v316
      %v421 = vunpack.c.l.b16 %v317
      %v422 = vunpack.c.l.b16 %v318
      %v423 = vunpack.c.l.b16 %v319
      %v424 = vunpack.c.l.b16 %v320
      %v425 = vunpack.c.l.b16 %v321
      %v426 = vunpack.c.l.b16 %v322
      %v427 = vunpack.c.l.b16 %v323
      %v428 = vunpack.c.l.b16 %v324
      %v429 = vunpack.c.l.b16 %v325
      %v430 = vunpack.c.l.b16 %v326
      %v431 = vunpack.c.l.b16 %v327
      %v432 = vunpack.c.l.b16 %v328
      %v433 = vunpack.c.l.b16 %v329
      %v434 = vunpack.c.l.b16 %v330
      %v435 = vunpack.c.l.b16 %v331
      %v436 = vunpack.c.l.b16 %v332
      %v437 = vpack.c.b16 %v406, %v405
      %v438 = vpack.c.b16 %v408, %v407
      %v439 = vpack.c.b16 %v410, %v409
      %v440 = vpack.c.b16 %v412, %v411
      %v441 = vpack.c.b16 %v414, %v413
      %v442 = vpack.c.b16 %v416, %v415
      %v443 = vpack.c.b16 %v418, %v417
      %v444 = vpack.c.b16 %v420, %v419
      %v445 = vpack.c.b16 %v422, %v421
      %v446 = vpack.c.b16 %v424, %v423
      %v447 = vpack.c.b16 %v426, %v425
      %v448 = vpack.c.b16 %v428, %v427
      %v449 = vpack.c.b16 %v430, %v429
      %v450 = vpack.c.b16 %v432, %v431
      %v451 = vpack.c.b16 %v434, %v433
      %v452 = vpack.c.b16 %v436, %v435
      %469 = vmatprep.subr.bf16.mxu0 0
      %470 = vmatpush1.bf16.msra.mxu0 %v437
      %471 = vmatprep.subr.bf16.mxu0 0
      %472 = vmatpush1.bf16.msra.mxu0 %v438
      %473 = vmatprep.subr.bf16.mxu0 0
      %474 = vmatpush1.bf16.msra.mxu0 %v439
      %475 = vmatprep.subr.bf16.mxu0 0
      %476 = vmatpush1.bf16.msra.mxu0 %v440
      %477 = vmatprep.subr.bf16.mxu0 0
      %478 = vmatpush1.bf16.msra.mxu0 %v441
      %479 = vmatprep.subr.bf16.mxu0 0
      %480 = vmatpush1.bf16.msra.mxu0 %v442
      %481 = vmatprep.subr.bf16.mxu0 0
      %482 = vmatpush1.bf16.msra.mxu0 %v443
      %483 = vmatprep.subr.bf16.mxu0 0
      %484 = vmatpush1.bf16.msra.mxu0 %v444
      %485 = vmatprep.subr.bf16.mxu0 0
      %486 = vmatpush1.bf16.msra.mxu0 %v445
      %487 = vmatprep.subr.bf16.mxu0 0
      %488 = vmatpush1.bf16.msra.mxu0 %v446
      %489 = vmatprep.subr.bf16.mxu0 0
      %490 = vmatpush1.bf16.msra.mxu0 %v447
      %491 = vmatprep.subr.bf16.mxu0 0
      %492 = vmatpush1.bf16.msra.mxu0 %v448
      %493 = vmatprep.subr.bf16.mxu0 0
      %494 = vmatpush1.bf16.msra.mxu0 %v449
      %495 = vmatprep.subr.bf16.mxu0 0
      %496 = vmatpush1.bf16.msra.mxu0 %v450
      %497 = vmatprep.subr.bf16.mxu0 0
      %498 = vmatpush1.bf16.msra.mxu0 %v451
      %499 = vmatprep.subr.bf16.mxu0 0
      %500 = vmatpush1.bf16.msra.mxu0 %v452
      %501 = vmatprep.mubr.bf16.mxu0 %v358
      %502 = vmatmul.mubr.bf16.gmra.mrb[0].mxu0 %v357
      %v503 = vpop.f32.mrb[0].mxu0
      %v504 = vadd.f32 0.0, %v503
      %v505 = vpop.f32.mrb[0].mxu0
      %v506 = vpop.f32.mrb[0].mxu0
      %v507 = vadd.f32 0.0, %v506
      %v508 = vpop.f32.mrb[0].mxu0
      %509 = vmatprep.mubr.bf16.mxu0 %v360
      %510 = vmatmul.mubr.bf16.gmra.mrb[0].mxu0 %v359
      %v511 = vpop.f32.mrb[0].mxu0
      %v512 = vadd.f32 0.0, %v511
      %v513 = vpop.f32.mrb[0].mxu0
      %v514 = vpop.f32.mrb[0].mxu0
      %v515 = vadd.f32 0.0, %v514
      %v516 = vpop.f32.mrb[0].mxu0
      %517 = vmatprep.mubr.bf16.mxu0 %v362
      %518 = vmatmul.mubr.bf16.gmra.mrb[0].mxu0 %v361
      %v519 = vpop.f32.mrb[0].mxu0
      %v520 = vadd.f32 0.0, %v519
      %v521 = vpop.f32.mrb[0].mxu0
      %v522 = vpop.f32.mrb[0].mxu0
      %v523 = vadd.f32 0.0, %v522
      %v524 = vpop.f32.mrb[0].mxu0
      %525 = vmatprep.mubr.bf16.mxu0 %v364
      %526 = vmatmul.mubr.bf16.gmra.mrb[0].mxu0 %v363
      %v527 = vpop.f32.mrb[0].mxu0
      %v528 = vadd.f32 0.0, %v527
      %v529 = vpop.f32.mrb[0].mxu0
      %v530 = vpop.f32.mrb[0].mxu0
      %v531 = vadd.f32 0.0, %v530
      %v532 = vpop.f32.mrb[0].mxu0
      %533 = vdwg.mxu0
      %v534 = vadd.f32 %v285, %v504
      %v535 = vadd.f32 %v286, %v507
      %v536 = vadd.f32 %v287, %v512
      %v537 = vadd.f32 %v288, %v515
      %v538 = vadd.f32 %v289, %v520
      %v539 = vadd.f32 %v290, %v523
      %v540 = vadd.f32 %v291, %v528
      %v541 = vadd.f32 %v292, %v531
      %542 = vst [vmem:[#allocation2] sm:$0xff] %v534
      %543 = vst [vmem:[#allocation2 + $0x8] sm:$0xff] %v535
      %544 = vst [vmem:[#allocation2 + $0x10] sm:$0xff] %v536
      %545 = vst [vmem:[#allocation2 + $0x18] sm:$0xff] %v537
      %546 = vst [vmem:[#allocation2 + $0x20] sm:$0xff] %v538
      %547 = vst [vmem:[#allocation2 + $0x28] sm:$0xff] %v539
      %548 = vst [vmem:[#allocation2 + $0x30] sm:$0xff] %v540
      %549 = vst [vmem:[#allocation2 + $0x38] sm:$0xff] %v541
      // Predicated region
      $region33: #{discriminator_forward.4} parent=27 // pred_check
        %p550 = pneg %p273
      $region34: #{discriminator_forward.4} parent=27 // pred_check_branch
        %552 = sbr.rel (%p550) target = $region36
      $region35: #{discriminator_forward.4} parent=27 // pred_region
        %v553 = vld [vmem:[#allocation2] sm:$0xff]
        %v554 = vld [vmem:[#allocation2 + $0x8] sm:$0xff]
        %v555 = vld [vmem:[#allocation2 + $0x10] sm:$0xff]
        %v556 = vld [vmem:[#allocation2 + $0x18] sm:$0xff]
        %v557 = vld [vmem:[#allocation2 + $0x20] sm:$0xff]
        %v558 = vld [vmem:[#allocation2 + $0x28] sm:$0xff]
        %v559 = vld [vmem:[#allocation2 + $0x30] sm:$0xff]
        %v560 = vld [vmem:[#allocation2 + $0x38] sm:$0xff]
        %v561 = vpack.c.bf16 %v554, %v553
        %v562 = vpack.c.bf16 %v556, %v555
        %v563 = vpack.c.bf16 %v558, %v557
        %v564 = vpack.c.bf16 %v560, %v559
        %v569 = vunpack.c.l.b16 %v561
        %v570 = vunpack.c.h.b16 %v561
        %v571 = vunpack.c.l.b16 %v562
        %v572 = vunpack.c.h.b16 %v562
        %v573 = vunpack.c.l.b16 %v563
        %v574 = vunpack.c.h.b16 %v563
        %v575 = vunpack.c.l.b16 %v564
        %v576 = vunpack.c.h.b16 %v564
        %v577 = vpack.c.b16 %v569, %v569
        %v578 = vpack.c.b16 %v570, %v570
        %v579 = vpack.c.b16 %v571, %v571
        %v580 = vpack.c.b16 %v572, %v572
        %v581 = vpack.c.b16 %v573, %v573
        %v582 = vpack.c.b16 %v574, %v574
        %v583 = vpack.c.b16 %v575, %v575
        %v584 = vpack.c.b16 %v576, %v576
        %593 = vst [vmem:[%s263] sm:$0xf] %v577
        %594 = vst [vmem:[%s263 + $0x4] sm:$0xf] %v578
        %595 = vst [vmem:[%s263 + $0x8] sm:$0xf] %v579
        %596 = vst [vmem:[%s263 + $0xc] sm:$0xf] %v580
        %597 = vst [vmem:[%s263 + $0x10] sm:$0xf] %v581
        %598 = vst [vmem:[%s263 + $0x14] sm:$0xf] %v582
        %599 = vst [vmem:[%s263 + $0x18] sm:$0xf] %v583
        %600 = vst [vmem:[%s263 + $0x1c] sm:$0xf] %v584
        %v601 = vadd.f32 %v553, %v554
        %v602 = vadd.f32 %v601, %v555
        %v603 = vadd.f32 %v602, %v556
        %v604 = vadd.f32 %v603, %v557
        %v605 = vadd.f32 %v604, %v558
        %v606 = vadd.f32 %v605, %v559
        %v607 = vadd.f32 %v606, %v560
        %v608 = vrot.slane %v607, 4
        %v609 = vadd.f32 %v607, %v608
        %v610 = vrot.slane %v609, 2
        %v611 = vadd.f32 %v609, %v610
        %v612 = vrot.slane %v611, 1
        %v613 = vadd.f32 %v611, %v612
        %v614 = vmul.f32 %v553, %v553
        %v615 = vmul.f32 %v554, %v554
        %v616 = vmul.f32 %v555, %v555
        %v617 = vmul.f32 %v556, %v556
        %v618 = vmul.f32 %v557, %v557
        %v619 = vmul.f32 %v558, %v558
        %v620 = vmul.f32 %v559, %v559
        %v621 = vmul.f32 %v560, %v560
        %v622 = vadd.f32 %v614, %v615
        %v623 = vadd.f32 %v622, %v616
        %v624 = vadd.f32 %v623, %v617
        %v625 = vadd.f32 %v624, %v618
        %v626 = vadd.f32 %v625, %v619
        %v627 = vadd.f32 %v626, %v620
        %v628 = vadd.f32 %v627, %v621
        %v629 = vrot.slane %v628, 4
        %v630 = vadd.f32 %v628, %v629
        %v631 = vrot.slane %v630, 2
        %v632 = vadd.f32 %v630, %v631
        %v633 = vrot.slane %v632, 1
        %v634 = vadd.f32 %v632, %v633
        %v635 = vlaneseq
        %v636 = vshrl.u32 %v635, 7
        %vm637 = vcmp.lt.s32.totalorder %v636, 4
        %v638 = vsel %vm637, %v613, %v634
        %639 = vst [vmem:[%s271] sm:$0xff] %v638
      $region36: #{discriminator_forward.4} parent=27 // pred_fallthru
        _
      %s640 = smul.u32 8, %s20
      %p641 = scmp.lt.s32.totalorder %s640, 15
      %s642 = scalar_select %p641, %s640, 15
      %p643 = scmp.lt.s32.totalorder %s21, 0
      %s644 = scalar_select %p643, %s21, 0
      %s645 = sadd.s32 %s644, %s642
      %s646 = smul.addr %s645, 4
      %s647 = scalar_lea.vmem %s2, %s646
      %p648 = scmp.lt.s32.totalorder %s20, 1
      %s649 = scalar_select %p648, %s20, 1
      %p650 = scmp.lt.s32.totalorder %s21, 0
      %s651 = scalar_select %p650, %s21, 0
      %s652 = sadd.s32 %s651, %s649
      %s653 = smul.addr %s652, 8
      %s654 = scalar_lea.vmem %s3, %s653
      // Predicated region
      $region37: #{discriminator_forward.4} parent=27 // pred_check
        %p655 = pneg %p110
      $region38: #{discriminator_forward.4} parent=27 // pred_check_branch
        %657 = sbr.rel (%p655) target = $region40
      $region39: #{discriminator_forward.4} parent=27 // pred_region
        %s658 = smul.u32 8, %s20
      $region40: #{discriminator_forward.4} parent=27 // pred_fallthru
        _
      // Predicated region
      $region41: #{discriminator_forward.4} parent=27 // pred_check
        %p659 = pneg %p138
      $region42: #{discriminator_forward.4} parent=27 // pred_check_branch
        %661 = sbr.rel (%p659) target = $region44
      $region43: #{discriminator_forward.4} parent=27 // pred_region
        _
      $region44: #{discriminator_forward.4} parent=27 // pred_fallthru
        _
    $region28: #{discriminator_forward.4} parent=5 // pred_fallthru
      _
    %p662 = scmp.le.s32.totalorder 2, %s10
    // Predicated region
    $region45: #{discriminator_forward.4} parent=5 // pred_check
      %p663 = pneg %p662
    $region46: #{discriminator_forward.4} parent=5 // pred_check_branch
      %665 = sbr.rel (%p663) target = $region48
    $region47: #{discriminator_forward.4} parent=5 // pred_region
      %s666 = ssub.s32 %s10, 2
      // Predicated region
      $region49: #{discriminator_forward.4} parent=47 // pred_check
        %p667 = pneg %p116
      $region50: #{discriminator_forward.4} parent=47 // pred_check_branch
        %669 = sbr.rel (%p667) target = $region52
      $region51: #{discriminator_forward.4} parent=47 // pred_region
        %s670 = smul.u32 8, %s23
        %p671 = scmp.lt.s32.totalorder %s670, 15
        %s672 = scalar_select %p671, %s670, 15
        %p673 = scmp.lt.s32.totalorder %s24, 0
        %s674 = scalar_select %p673, %s24, 0
        %s675 = sadd.s32 %s674, %s672
        %s676 = smul.addr %s675, 4
        %s677 = scalar_lea.vmem %s2, %s676
      $region52: #{discriminator_forward.4} parent=47 // pred_fallthru
        _
      // Predicated region
      $region53: #{discriminator_forward.4} parent=47 // pred_check
        %p678 = pneg %p144
      $region54: #{discriminator_forward.4} parent=47 // pred_check_branch
        %680 = sbr.rel (%p678) target = $region56
      $region55: #{discriminator_forward.4} parent=47 // pred_region
        %p681 = scmp.lt.s32.totalorder %s23, 1
        %s682 = scalar_select %p681, %s23, 1
        %p683 = scmp.lt.s32.totalorder %s24, 0
        %s684 = scalar_select %p683, %s24, 0
        %s685 = sadd.s32 %s684, %s682
        %s686 = smul.addr %s685, 8
        %s687 = scalar_lea.vmem %s3, %s686
      $region56: #{discriminator_forward.4} parent=47 // pred_fallthru
        _
    $region48: #{discriminator_forward.4} parent=5 // pred_fallthru
      _
  $region6: #{discriminator_forward.4} parent=0 // loop_footer
    %s14 = sadd.s32 1, %s10
  $region7: #{discriminator_forward.4} parent=0 // loop_footer_branch
    %9 = sbr.rel target = $region3
  $region8: #{discriminator_forward.4} parent=0 // loop_exit
    _

// kernel: discriminator_forward.5
$region0: #{discriminator_forward.5}
  #allocation0 [shape = 'u32[]', space=smem, size = 0x4, offset = 0x4, fixed_abs, tag = 'smem constant byte address 0x4 - core index']
  #allocation1 [shape = 'u32[144,128]{1,0:T(1,128)}', space=vmem, size = 0x12000, scoped, tag = 'internal scratch']
  %s0 = inlined_call_operand.vmem [shape: bf16[128,128], index: 0, kind: input, shape index: {}]
  %s1 = inlined_call_operand.vmem [shape: f32[1,128], index: 1, kind: input, shape index: {}]
  %s2 = inlined_call_operand.vmem [shape: f32[1,128], index: 2, kind: input, shape index: {}]
  %s3 = inlined_call_operand.vmem [shape: bf16[128,128], index: 3, kind: output, shape index: {}]
  %s4 = sld [smem:[#allocation0]]
  $region45: #{discriminator_forward.5} parent=0
    _
  %s6 = ssub.s32 1, %s4
  %s7 = scalar_select 0, %s6, %s4
  loop: start=0, step=1, limit=4
  $region2: #{discriminator_forward.5} parent=0 // loop_pre_header
    _
  $region3: #{discriminator_forward.5} parent=0 // loop_header
    %s9 = sphi 0, %s13
    %p10 = scmp.ge.s32.totalorder %s9, 4
    %s19 = sphi 0, %s21
    %s22 = sphi 0, %s19
    %s23 = sphi 0, %s22
    %s39 = sphi 0, %s23
    %s43 = sphi 0, %s43
    %s45 = sphi 0, %s43
    %s46 = sphi 0, %s45
    %s60 = sphi 0, %s46
    %s64 = sphi 0, %s64
    %s66 = sphi 0, %s64
    %s67 = sphi 0, %s66
    %s81 = sphi 0, %s67
    %s87 = sphi 0, %s89
    %s90 = sphi 0, %s87
    %s91 = sphi 0, %s90
    %s107 = sphi 0, %s91
  $region4: #{discriminator_forward.5} parent=0 // loop_header_branch
    %12 = sbr.rel (%p10) target = $region8
  $region5: #{discriminator_forward.5} parent=0 // loop_body
    %s14 = ssub.s32 %s9, 1
    %s15 = ssub.s32 %s9, 2
    %s16 = sadd.s32 %s9, 1
    %s17 = ssub.s32 %s9, %s16
    %p18 = scmp.eq.s32.totalorder %s17, 0
    %s20 = sadd.s32 %s19, 1
    %s21 = scalar_select %p18, %s19, %s20
    %p24 = pneg %p18
    %p25 = scmp.eq.s32.totalorder %s9, 1
    %p26 = por %p24, %p25
    %p27 = scmp.ne.s32.totalorder %s19, %s22
    %p28 = scmp.eq.s32.totalorder %s9, 0
    %p29 = por %p27, %p28
    %p30 = scmp.ne.s32.totalorder %s19, %s22
    %p31 = scmp.eq.s32.totalorder %s14, 1
    %p32 = por %p30, %p31
    %p33 = scmp.ne.s32.totalorder %s22, %s23
    %p34 = scmp.eq.s32.totalorder %s14, 0
    %p35 = por %p33, %p34
    %p36 = scmp.ne.s32.totalorder %s22, %s23
    %p37 = scmp.eq.s32.totalorder %s15, 1
    %p38 = por %p36, %p37
    %p40 = scmp.ne.s32.totalorder %s23, %s39
    %p41 = scmp.eq.s32.totalorder %s15, 0
    %p42 = por %p40, %p41
    %s44 = sadd.s32 %s43, 1
    %p47 = scmp.eq.s32.totalorder %s9, 1
    %p48 = scmp.ne.s32.totalorder %s43, %s45
    %p49 = scmp.eq.s32.totalorder %s9, 0
    %p50 = por %p48, %p49
    %p51 = scmp.ne.s32.totalorder %s43, %s45
    %p52 = scmp.eq.s32.totalorder %s14, 1
    %p53 = por %p51, %p52
    %p54 = scmp.ne.s32.totalorder %s45, %s46
    %p55 = scmp.eq.s32.totalorder %s14, 0
    %p56 = por %p54, %p55
    %p57 = scmp.ne.s32.totalorder %s45, %s46
    %p58 = scmp.eq.s32.totalorder %s15, 1
    %p59 = por %p57, %p58
    %p61 = scmp.ne.s32.totalorder %s46, %s60
    %p62 = scmp.eq.s32.totalorder %s15, 0
    %p63 = por %p61, %p62
    %s65 = sadd.s32 %s64, 1
    %p68 = scmp.eq.s32.totalorder %s9, 1
    %p69 = scmp.ne.s32.totalorder %s64, %s66
    %p70 = scmp.eq.s32.totalorder %s9, 0
    %p71 = por %p69, %p70
    %p72 = scmp.ne.s32.totalorder %s64, %s66
    %p73 = scmp.eq.s32.totalorder %s14, 1
    %p74 = por %p72, %p73
    %p75 = scmp.ne.s32.totalorder %s66, %s67
    %p76 = scmp.eq.s32.totalorder %s14, 0
    %p77 = por %p75, %p76
    %p78 = scmp.ne.s32.totalorder %s66, %s67
    %p79 = scmp.eq.s32.totalorder %s15, 1
    %p80 = por %p78, %p79
    %p82 = scmp.ne.s32.totalorder %s67, %s81
    %p83 = scmp.eq.s32.totalorder %s15, 0
    %p84 = por %p82, %p83
    %s85 = ssub.s32 %s9, %s16
    %p86 = scmp.eq.s32.totalorder %s85, 0
    %s88 = sadd.s32 %s87, 1
    %s89 = scalar_select %p86, %s87, %s88
    %p92 = pneg %p86
    %p93 = scmp.eq.s32.totalorder %s9, 1
    %p94 = por %p92, %p93
    %p95 = scmp.ne.s32.totalorder %s87, %s90
    %p96 = scmp.eq.s32.totalorder %s9, 0
    %p97 = por %p95, %p96
    %p98 = scmp.ne.s32.totalorder %s87, %s90
    %p99 = scmp.eq.s32.totalorder %s14, 1
    %p100 = por %p98, %p99
    %p101 = scmp.ne.s32.totalorder %s90, %s91
    %p102 = scmp.eq.s32.totalorder %s14, 0
    %p103 = por %p101, %p102
    %p104 = scmp.ne.s32.totalorder %s90, %s91
    %p105 = scmp.eq.s32.totalorder %s15, 1
    %p106 = por %p104, %p105
    %p108 = scmp.ne.s32.totalorder %s91, %s107
    %p109 = scmp.eq.s32.totalorder %s15, 0
    %p110 = por %p108, %p109
    %p111 = scmp.le.s32.totalorder 1, %s9
    %p112 = scmp.lt.s32.totalorder %s9, 3
    %p113 = pnand %p111, %p112
    %p114 = pneg %p113
    // Predicated region
    $region9: #{discriminator_forward.5} parent=5 // pred_check
      _
    $region10: #{discriminator_forward.5} parent=5 // pred_check_branch
      %116 = sbr.rel (%p113) target = $region12
    $region11: #{discriminator_forward.5} parent=5 // pred_region
      %s117 = ssub.s32 %s9, 1
      // Predicated region
      $region13: #{discriminator_forward.5} parent=11 // pred_check
        %p118 = pneg %p56
      $region14: #{discriminator_forward.5} parent=11 // pred_check_branch
        %120 = sbr.rel (%p118) target = $region16
      $region15: #{discriminator_forward.5} parent=11 // pred_region
        _
      $region16: #{discriminator_forward.5} parent=11 // pred_fallthru
        _
      // Predicated region
      $region17: #{discriminator_forward.5} parent=11 // pred_check
        %p121 = pneg %p77
      $region18: #{discriminator_forward.5} parent=11 // pred_check_branch
        %123 = sbr.rel (%p121) target = $region20
      $region19: #{discriminator_forward.5} parent=11 // pred_region
        _
      $region20: #{discriminator_forward.5} parent=11 // pred_fallthru
        _
    $region12: #{discriminator_forward.5} parent=5 // pred_fallthru
      _
    %p124 = scmp.lt.s32.totalorder %s9, 2
    // Predicated region
    $region21: #{discriminator_forward.5} parent=5 // pred_check
      %p125 = pneg %p124
    $region22: #{discriminator_forward.5} parent=5 // pred_check_branch
      %127 = sbr.rel (%p125) target = $region24
    $region23: #{discriminator_forward.5} parent=5 // pred_region
      // Predicated region
      $region25: #{discriminator_forward.5} parent=23 // pred_check
        %p128 = pneg %p29
      $region26: #{discriminator_forward.5} parent=23 // pred_check_branch
        %130 = sbr.rel (%p128) target = $region28
      $region27: #{discriminator_forward.5} parent=23 // pred_region
        %s131 = smul.u32 8, %s9
        %p132 = scmp.lt.s32.totalorder %s131, 15
        %s133 = scalar_select %p132, %s131, 15
        %s134 = smul.addr %s133, 4
        %s135 = scalar_lea.vmem %s0, %s134
        %s136 = smul.u32 8, %s9
      $region28: #{discriminator_forward.5} parent=23 // pred_fallthru
        _
    $region24: #{discriminator_forward.5} parent=5 // pred_fallthru
      _
    %p137 = scmp.le.s32.totalorder 1, %s9
    %p138 = scmp.lt.s32.totalorder %s9, 3
    %p139 = pnand %p137, %p138
    %p140 = pneg %p139
    // Predicated region
    $region29: #{discriminator_forward.5} parent=5 // pred_check
      _
    $region30: #{discriminator_forward.5} parent=5 // pred_check_branch
      %142 = sbr.rel (%p139) target = $region32
    $region31: #{discriminator_forward.5} parent=5 // pred_region
      %s143 = ssub.s32 %s9, 1
      %s144 = smul.u32 8, %s14
      %p145 = scmp.lt.s32.totalorder %s144, 15
      %s146 = scalar_select %p145, %s144, 15
      %s147 = smul.addr %s146, 4
      %s148 = scalar_lea.vmem %s0, %s147
      %p149 = pneg %p35
      %p150 = pneg %p32
      %p151 = pneg %p56
      %p152 = pneg %p53
      %p153 = pneg %p77
      %p154 = pneg %p74
      %p155 = pneg %p103
      %p156 = pneg %p100
      %s157 = smul.u32 8, %s14
      %p158 = scmp.lt.s32.totalorder %s157, 15
      %s159 = scalar_select %p158, %s157, 15
      %s160 = smul.addr %s159, 4
      %s161 = scalar_lea.vmem %s3, %s160
      %s162 = smul.u32 8, %s14
      %p163 = scmp.lt.s32.totalorder %s162, 15
      %s164 = scalar_select %p163, %s162, 15
      %s165 = smul.addr %s164, 4
      %s166 = scalar_lea.vmem %s0, %s165
      %s167 = smul.u32 8, %s14
      %s168 = smul.u32 8, %s14
      %p169 = scmp.lt.s32.totalorder %s168, 15
      %s170 = scalar_select %p169, %s168, 15
      %s171 = smul.addr %s170, 4
      %s172 = scalar_lea.vmem %s3, %s171
      %s173 = smul.u32 8, %s14
      %v174 = vld [vmem:[%s166] sm:$0xf]
      %v175 = vld [vmem:[%s166 + $0x4] sm:$0xf]
      %v176 = vld [vmem:[%s166 + $0x8] sm:$0xf]
      %v177 = vld [vmem:[%s166 + $0xc] sm:$0xf]
      %v178 = vld [vmem:[%s166 + $0x10] sm:$0xf]
      %v179 = vld [vmem:[%s166 + $0x14] sm:$0xf]
      %v180 = vld [vmem:[%s166 + $0x18] sm:$0xf]
      %v181 = vld [vmem:[%s166 + $0x1c] sm:$0xf]
      %v182 = vunpack.c.l.bf16 %v174
      %v183 = vunpack.c.l.bf16 %v175
      %v184 = vunpack.c.l.bf16 %v176
      %v185 = vunpack.c.l.bf16 %v177
      %v186 = vunpack.c.l.bf16 %v178
      %v187 = vunpack.c.l.bf16 %v179
      %v188 = vunpack.c.l.bf16 %v180
      %v189 = vunpack.c.l.bf16 %v181
      %v190 = vld [vmem:[%s1] sm:$0x1]
      %v192 = vlaneseq
      %v193 = vshrl.u32 %v192, 7
      %v194 = vsub.s32 0, %v193
      %v195 = vrot.slane %v190, %v194
      %v197 = vmul.f32 %v182, %v195
      %v198 = vmul.f32 %v183, %v195
      %v199 = vmul.f32 %v184, %v195
      %v200 = vmul.f32 %v185, %v195
      %v201 = vmul.f32 %v186, %v195
      %v202 = vmul.f32 %v187, %v195
      %v203 = vmul.f32 %v188, %v195
      %v204 = vmul.f32 %v189, %v195
      %v205 = vld [vmem:[%s2] sm:$0x1]
      %v207 = vlaneseq
      %v208 = vshrl.u32 %v207, 7
      %v209 = vsub.s32 0, %v208
      %v210 = vrot.slane %v205, %v209
      %v212 = vadd.f32 %v197, %v210
      %v213 = vadd.f32 %v198, %v210
      %v214 = vadd.f32 %v199, %v210
      %v215 = vadd.f32 %v200, %v210
      %v216 = vadd.f32 %v201, %v210
      %v217 = vadd.f32 %v202, %v210
      %v218 = vadd.f32 %v203, %v210
      %v219 = vadd.f32 %v204, %v210
      %vm220 = vcmp.gt.f32.partialorder %v212, 0.0
      %vm221 = vcmp.gt.f32.partialorder %v213, 0.0
      %vm222 = vcmp.gt.f32.partialorder %v214, 0.0
      %vm223 = vcmp.gt.f32.partialorder %v215, 0.0
      %vm224 = vcmp.gt.f32.partialorder %v216, 0.0
      %vm225 = vcmp.gt.f32.partialorder %v217, 0.0
      %vm226 = vcmp.gt.f32.partialorder %v218, 0.0
      %vm227 = vcmp.gt.f32.partialorder %v219, 0.0
      %v228 = vmul.f32 %v212, 0.2
      %v229 = vmul.f32 %v213, 0.2
      %v230 = vmul.f32 %v214, 0.2
      %v231 = vmul.f32 %v215, 0.2
      %v232 = vmul.f32 %v216, 0.2
      %v233 = vmul.f32 %v217, 0.2
      %v234 = vmul.f32 %v218, 0.2
      %v235 = vmul.f32 %v219, 0.2
      %v236 = vsel %vm220, %v212, %v228
      %v237 = vsel %vm221, %v213, %v229
      %v238 = vsel %vm222, %v214, %v230
      %v239 = vsel %vm223, %v215, %v231
      %v240 = vsel %vm224, %v216, %v232
      %v241 = vsel %vm225, %v217, %v233
      %v242 = vsel %vm226, %v218, %v234
      %v243 = vsel %vm227, %v219, %v235
      %v244 = vpack.c.bf16 %v237, %v236
      %v245 = vpack.c.bf16 %v239, %v238
      %v246 = vpack.c.bf16 %v241, %v240
      %v247 = vpack.c.bf16 %v243, %v242
      %v252 = vunpack.c.l.b16 %v244
      %v253 = vunpack.c.h.b16 %v244
      %v254 = vunpack.c.l.b16 %v245
      %v255 = vunpack.c.h.b16 %v245
      %v256 = vunpack.c.l.b16 %v246
      %v257 = vunpack.c.h.b16 %v246
      %v258 = vunpack.c.l.b16 %v247
      %v259 = vunpack.c.h.b16 %v247
      %v260 = vpack.c.b16 %v252, %v252
      %v261 = vpack.c.b16 %v253, %v253
      %v262 = vpack.c.b16 %v254, %v254
      %v263 = vpack.c.b16 %v255, %v255
      %v264 = vpack.c.b16 %v256, %v256
      %v265 = vpack.c.b16 %v257, %v257
      %v266 = vpack.c.b16 %v258, %v258
      %v267 = vpack.c.b16 %v259, %v259
      %276 = vst [vmem:[%s172] sm:$0xf] %v260
      %277 = vst [vmem:[%s172 + $0x4] sm:$0xf] %v261
      %278 = vst [vmem:[%s172 + $0x8] sm:$0xf] %v262
      %279 = vst [vmem:[%s172 + $0xc] sm:$0xf] %v263
      %280 = vst [vmem:[%s172 + $0x10] sm:$0xf] %v264
      %281 = vst [vmem:[%s172 + $0x14] sm:$0xf] %v265
      %282 = vst [vmem:[%s172 + $0x18] sm:$0xf] %v266
      %283 = vst [vmem:[%s172 + $0x1c] sm:$0xf] %v267
      %s284 = smul.u32 8, %s14
      %p285 = scmp.lt.s32.totalorder %s284, 15
      %s286 = scalar_select %p285, %s284, 15
      %s287 = smul.addr %s286, 4
      %s288 = scalar_lea.vmem %s3, %s287
      // Predicated region
      $region33: #{discriminator_forward.5} parent=31 // pred_check
        %p289 = pneg %p100
      $region34: #{discriminator_forward.5} parent=31 // pred_check_branch
        %291 = sbr.rel (%p289) target = $region36
      $region35: #{discriminator_forward.5} parent=31 // pred_region
        %s292 = smul.u32 8, %s14
      $region36: #{discriminator_forward.5} parent=31 // pred_fallthru
        _
    $region32: #{discriminator_forward.5} parent=5 // pred_fallthru
      _
    %p293 = scmp.le.s32.totalorder 2, %s9
    // Predicated region
    $region37: #{discriminator_forward.5} parent=5 // pred_check
      %p294 = pneg %p293
    $region38: #{discriminator_forward.5} parent=5 // pred_check_branch
      %296 = sbr.rel (%p294) target = $region40
    $region39: #{discriminator_forward.5} parent=5 // pred_region
      %s297 = ssub.s32 %s9, 2
      // Predicated region
      $region41: #{discriminator_forward.5} parent=39 // pred_check
        %p298 = pneg %p106
      $region42: #{discriminator_forward.5} parent=39 // pred_check_branch
        %300 = sbr.rel (%p298) target = $region44
      $region43: #{discriminator_forward.5} parent=39 // pred_region
        %s301 = smul.u32 8, %s15
        %p302 = scmp.lt.s32.totalorder %s301, 15
        %s303 = scalar_select %p302, %s301, 15
        %s304 = smul.addr %s303, 4
        %s305 = scalar_lea.vmem %s3, %s304
      $region44: #{discriminator_forward.5} parent=39 // pred_fallthru
        _
    $region40: #{discriminator_forward.5} parent=5 // pred_fallthru
      _
  $region6: #{discriminator_forward.5} parent=0 // loop_footer
    %s13 = sadd.s32 1, %s9
  $region7: #{discriminator_forward.5} parent=0 // loop_footer_branch
    %8 = sbr.rel target = $region3
  $region8: #{discriminator_forward.5} parent=0 // loop_exit
    _

</llo_original>
